<compile_context>
chip_gen: v7x
topology: tpu7x:2x2x1
jax: 0.10.0
libtpu: 0.0.40
codegen_flags: <defaults>
</compile_context>

<pallas_src>
import functools

import jax
import jax.numpy as jnp
from jax import lax
from jax.experimental import pallas as pl
from jax.experimental.pallas import tpu as pltpu


def _lstm_scan_kernel(len_sref, w_sref,            # scalar-prefetch (SMEM)
                      pg_ref, len_ref, whh_ref,    # VMEM inputs
                      acc_ref,                     # VMEM output (resident accumulator)
                      h_sc, c_sc,                  # VMEM scratch (h, c state)
                      *, hidden, t_block):
    tb = pl.program_id(0)

    @pl.when(tb == 0)
    def _init():
        h_sc[...] = jnp.zeros_like(h_sc)
        c_sc[...] = jnp.zeros_like(c_sc)
        acc_ref[...] = jnp.zeros_like(acc_ref)

    block_start = tb * t_block
    max_len = len_sref[0]          # lengths sorted descending (enforce_sorted=True)

    @pl.when(block_start < max_len)     # skip fully-padded tail time blocks
    def _compute():
        H = hidden
        lens = len_ref[...]             # (B, 1) int32 -> vectorized validity mask
        whh = whh_ref[...]              # (H, 4H) bf16, resident across the grid
        T_total = w_sref.shape[0]

        def step(t_local, carry):
            h, c, acc = carry
            t = block_start + t_local
            # Only the recurrent projection sits on the sequential critical path;
            # x @ W_ih^T + biases was precomputed (hoisted) outside the kernel.
            gates = pg_ref[t_local] + jnp.dot(
                h.astype(jnp.bfloat16), whh,
                preferred_element_type=jnp.float32)            # (B, 4H) f32
            i_g = jax.nn.sigmoid(gates[:, 0 * H:1 * H])
            f_g = jax.nn.sigmoid(gates[:, 1 * H:2 * H])
            g_g = jnp.tanh(gates[:, 2 * H:3 * H])
            o_g = jax.nn.sigmoid(gates[:, 3 * H:4 * H])
            c_new = f_g * c + i_g * g_g
            h_new = o_g * jnp.tanh(c_new)
            # packed-sequence semantics: state advances only while t < length[b];
            # rnn_out is zero-padded past the length, so padded steps add nothing
            # to the time-weighted sum.
            valid = t < lens                                   # (B, 1) bool
            c = jnp.where(valid, c_new, c)
            h = jnp.where(valid, h_new, h)
            w_t = w_sref[jnp.minimum(t, T_total - 1)]          # scalar time weight
            acc = acc + jnp.where(valid, w_t * h_new, 0.0)
            return h, c, acc

        h, c, acc = lax.fori_loop(
            0, t_block, step, (h_sc[...], c_sc[...], acc_ref[...]), unroll=True)
        h_sc[...] = h
        c_sc[...] = c
        acc_ref[...] = acc


def _epilogue(weighted, params):
    """inter_layer output is (H, B, 1); `.view(B, H)` is a raw row-major
    reinterpretation of that buffer (NOT a transpose); then tanh -> Linear ->
    log_softmax.  O(B*H), runs once -> plain XLA glue."""
    B, H = weighted.shape
    inter_hb = weighted.T + params["b_inter"]            # (H, B)
    inter = jnp.tanh(jnp.reshape(inter_hb, (B, H)))      # torch .view semantics
    logits = jnp.dot(inter, params["w_out"].T,
                     precision=lax.Precision.HIGHEST) + params["b_out"]
    return jax.nn.log_softmax(logits, axis=-1)


def model9_forward(seq, lengths, params, *, time_block=8):
    """seq: (T, B, E) float32 time-major; lengths: (B,) int, sorted descending
    with max(lengths) == T (what pack/pad_packed_sequence produce).
    Returns (B, n_out) log-probabilities."""
    T, B, E = seq.shape
    H = params["w_hh"].shape[1]                                      # w_hh: (4H, H)

    # --- hoisted input projection: one (T*B, E) @ (E, 4H) bf16 MXU matmul with
    #     f32 accumulation, done once outside the sequential recurrence. ---
    wih_t = params["w_ih"].T.astype(jnp.bfloat16)                    # (E, 4H)
    bias = (params["b_ih"] + params["b_hh"]).astype(jnp.float32)     # (4H,)
    pre_gates = jnp.einsum(
        "tbe,eg->tbg", seq.astype(jnp.bfloat16), wih_t,
        preferred_element_type=jnp.float32) + bias                   # (T, B, 4H) f32

    whh_t = params["w_hh"].T.astype(jnp.bfloat16)                    # (H, 4H) resident
    lens_smem = lengths.astype(jnp.int32)                            # (B,)  -> SMEM
    lens_vmem = lengths.astype(jnp.int32).reshape(B, 1)              # (B,1) -> vector mask
    w_inter = params["w_inter"].reshape(-1).astype(jnp.float32)      # (T,)  -> SMEM
    # TODO(synk): PyTorch builds nn.Linear(max(lengths), 1) with fresh random
    # weights on every forward(); here it is a deterministic parameter.

    t_block = max(1, min(time_block, T))
    n_blocks = pl.cdiv(T, t_block)

    kernel = functools.partial(_lstm_scan_kernel, hidden=H, t_block=t_block)

    grid_spec = pltpu.PrefetchScalarGridSpec(
        num_scalar_prefetch=2,                  # lengths + time weights -> SMEM
        grid=(n_blocks,),
        in_specs=[
            # (Tb, B, 4H) pre-gate slab per grid step (amortizes per-step overhead)
            pl.BlockSpec((t_block, B, 4 * H), lambda tb, *_: (tb, 0, 0)),
            pl.BlockSpec((B, 1), lambda tb, *_: (0, 0)),        # lengths (resident)
            pl.BlockSpec((H, 4 * H), lambda tb, *_: (0, 0)),    # W_hh^T   (resident)
            # NOTE: for large H, switch resident weights to whole-array VMEM
            # placement / single buffering and tile the 4H axis (v7x: 64 MiB VMEM).
        ],
        out_specs=pl.BlockSpec((B, H), lambda tb, *_: (0, 0)),  # resident accumulator
        scratch_shapes=[
            pltpu.VMEM((B, H), jnp.float32),    # h state
            pltpu.VMEM((B, H), jnp.float32),    # c state
        ],
    )

    weighted = pl.pallas_call(
        kernel,
        out_shape=jax.ShapeDtypeStruct((B, H), jnp.float32),
        grid_spec=grid_spec,
        compiler_params=pltpu.CompilerParams(
            dimension_semantics=("arbitrary",)),   # time recurrence is sequential
    )(lens_smem, w_inter, pre_gates, lens_vmem, whh_t)

    return _epilogue(weighted, params)


def _reference(seq, lengths, params, *, matmul_dtype=jnp.float32):
    """Pure-JAX re-implementation of Model9's forward.  matmul_dtype=bfloat16
    mirrors the kernel's MXU input precision (f32 accumulation either way)."""
    T, B, E = seq.shape
    H = params["w_hh"].shape[1]
    wih_t = params["w_ih"].T.astype(matmul_dtype)
    whh_t = params["w_hh"].T.astype(matmul_dtype)
    bias = (params["b_ih"] + params["b_hh"]).astype(jnp.float32)

    def step(carry, inp):
        h, c = carry
        x_t, t = inp
        gates = (jnp.dot(x_t.astype(matmul_dtype), wih_t,
                         preferred_element_type=jnp.float32,
                         precision=lax.Precision.HIGHEST)
                 + jnp.dot(h.astype(matmul_dtype), whh_t,
                           preferred_element_type=jnp.float32,
                           precision=lax.Precision.HIGHEST)
                 + bias)
        i_g = jax.nn.sigmoid(gates[:, :H])
        f_g = jax.nn.sigmoid(gates[:, H:2 * H])
        g_g = jnp.tanh(gates[:, 2 * H:3 * H])
        o_g = jax.nn.sigmoid(gates[:, 3 * H:])
        c_new = f_g * c + i_g * g_g
        h_new = o_g * jnp.tanh(c_new)
        valid = (t < lengths)[:, None]
        h = jnp.where(valid, h_new, h)
        c = jnp.where(valid, c_new, c)
        rnn_out_t = jnp.where(valid, h_new, 0.0)   # pad_packed_sequence zero-pads
        return (h, c), rnn_out_t

    zeros = jnp.zeros((B, H), jnp.float32)
    (_, _), rnn_out = lax.scan(step, (zeros, zeros),
                               (seq, jnp.arange(T, dtype=jnp.int32)))
    # inter_layer = nn.Linear(T, 1) over the time axis of rnn_out.transpose(0, 2).
    weighted = jnp.sum(rnn_out * params["w_inter"].reshape(T, 1, 1), axis=0)  # (B, H)
    return _epilogue(weighted, params)


def init_params(key, embedding_dim, n_hidden, n_out, seq_len):
    ks = jax.random.split(key, 8)
    bh = 1.0 / jnp.sqrt(n_hidden)
    bt = 1.0 / jnp.sqrt(seq_len)
    u = lambda k, shape, b: jax.random.uniform(k, shape, jnp.float32, -b, b)
    return {
        "w_ih": u(ks[0], (4 * n_hidden, embedding_dim), bh),
        "w_hh": u(ks[1], (4 * n_hidden, n_hidden), bh),
        "b_ih": u(ks[2], (4 * n_hidden,), bh),
        "b_hh": u(ks[3], (4 * n_hidden,), bh),
        "w_inter": u(ks[4], (1, seq_len), bt),   # nn.Linear(max(lengths), 1).weight
        "b_inter": u(ks[5], (), bt),             # nn.Linear(max(lengths), 1).bias
        "w_out": u(ks[6], (n_out, n_hidden), bh),
        "b_out": u(ks[7], (n_out,), bh),
    }


if __name__ == "__main__":
    T, B, E, H, n_out = 16, 2, 32, 32, 8

    key = jax.random.PRNGKey(0)
    k_seq, k_par = jax.random.split(key)

    seq = jax.random.normal(k_seq, (T, B, E), jnp.float32)
    # pack_padded_sequence(enforce_sorted=True): lengths sorted descending,
    # max(lengths) == padded sequence length.
    lengths = jnp.array([16, 9], dtype=jnp.int32)
    params = init_params(k_par, E, H, n_out, T)

    out = jax.block_until_ready(model9_forward(seq, lengths, params))
    assert out.shape == (B, n_out)

    # Tight check vs. a reference that uses the same bf16 MXU-input precision.
    ref_bf16 = _reference(seq, lengths, params, matmul_dtype=jnp.bfloat16)
    assert jnp.allclose(out, ref_bf16, atol=1e-4, rtol=1e-4), \
        float(jnp.max(jnp.abs(out - ref_bf16)))
    # Loose check vs. a full-f32 reference (bf16 MXU inputs perturb slightly).
    ref_f32 = _reference(seq, lengths, params, matmul_dtype=jnp.float32)
    assert jnp.allclose(out, ref_f32, atol=5e-2), \
        float(jnp.max(jnp.abs(out - ref_f32)))

    print("KERNEL_OK")
</pallas_src>

<mosaic_0001>
module attributes {stable_mosaic.version = 11 : i64} {
  func.func @_lstm_scan_kernel(%arg0: i32, %arg1: memref<2xi32, #tpu.memory_space<smem>>, %arg2: memref<16xf32, #tpu.memory_space<smem>>, %arg3: memref<8x2x128xf32, #tpu.memory_space<vmem>>, %arg4: memref<2x1xi32, #tpu.memory_space<vmem>>, %arg5: memref<32x128xbf16, #tpu.memory_space<vmem>>, %arg6: memref<2x32xf32, #tpu.memory_space<vmem>>, %arg7: memref<2x32xf32, #tpu.memory_space<vmem>>, %arg8: memref<2x32xf32, #tpu.memory_space<vmem>>) attributes {dimension_semantics = [#tpu.dimension_semantics<arbitrary>], iteration_bounds = array<i64: 2>, scalar_prefetch = 2 : i64, scratch_operands = 2 : i64, tpu.core_type = #tpu.core_type<tc>, window_params = [{transform_indices = @transform_0, window_bounds = array<i64: 8, 2, 128>}, {pipeline_mode = #tpu.pipeline_mode<synchronous>, transform_indices = @transform_1, window_bounds = array<i64: 2, 1>}, {pipeline_mode = #tpu.pipeline_mode<synchronous>, transform_indices = @transform_2, window_bounds = array<i64: 32, 128>}, {pipeline_mode = #tpu.pipeline_mode<synchronous>, transform_indices = @transform_3, window_bounds = array<i64: 2, 32>}]} {
    %c0_i32 = arith.constant 0 : i32
    %0 = arith.cmpi eq, %arg0, %c0_i32 : i32
    %1 = arith.extui %0 : i1 to i32
    %c0_i32_0 = arith.constant 0 : i32
    %2 = arith.cmpi ne, %1, %c0_i32_0 : i32
    scf.if %2 {
      %cst = arith.constant 0.000000e+00 : f32
      %8 = vector.broadcast %cst : f32 to vector<2x32xf32>
      %c0_2 = arith.constant 0 : index
      %c0_3 = arith.constant 0 : index
      %9 = vector.load %arg7[%c0_2, %c0_3] : memref<2x32xf32, #tpu.memory_space<vmem>>, vector<2x32xf32>
      tpu.vector_store %arg7[%c0_2, %c0_3], %8 {strides = array<i32>} : memref<2x32xf32, #tpu.memory_space<vmem>>, vector<2x32xf32>,
      %cst_4 = arith.constant 0.000000e+00 : f32
      %10 = vector.broadcast %cst_4 : f32 to vector<2x32xf32>
      %c0_5 = arith.constant 0 : index
      %c0_6 = arith.constant 0 : index
      %11 = vector.load %arg8[%c0_5, %c0_6] : memref<2x32xf32, #tpu.memory_space<vmem>>, vector<2x32xf32>
      tpu.vector_store %arg8[%c0_5, %c0_6], %10 {strides = array<i32>} : memref<2x32xf32, #tpu.memory_space<vmem>>, vector<2x32xf32>,
      %cst_7 = arith.constant 0.000000e+00 : f32
      %12 = vector.broadcast %cst_7 : f32 to vector<2x32xf32>
      %c0_8 = arith.constant 0 : index
      %c0_9 = arith.constant 0 : index
      %13 = vector.load %arg6[%c0_8, %c0_9] : memref<2x32xf32, #tpu.memory_space<vmem>>, vector<2x32xf32>
      tpu.vector_store %arg6[%c0_8, %c0_9], %12 {strides = array<i32>} : memref<2x32xf32, #tpu.memory_space<vmem>>, vector<2x32xf32>,
    } else {
    }
    %c8_i32 = arith.constant 8 : i32
    %3 = arith.muli %arg0, %c8_i32 : i32
    %c0 = arith.constant 0 : index
    %4 = memref.load %arg1[%c0] : memref<2xi32, #tpu.memory_space<smem>>
    %5 = arith.cmpi slt, %3, %4 : i32
    %6 = arith.extui %5 : i1 to i32
    %c0_i32_1 = arith.constant 0 : i32
    %7 = arith.cmpi ne, %6, %c0_i32_1 : i32
    scf.if %7 {
      %c0_2 = arith.constant 0 : index
      %c0_3 = arith.constant 0 : index
      %8 = vector.load %arg4[%c0_2, %c0_3] : memref<2x1xi32, #tpu.memory_space<vmem>>, vector<2x1xi32>
      %c0_4 = arith.constant 0 : index
      %c0_5 = arith.constant 0 : index
      %9 = vector.load %arg5[%c0_4, %c0_5] : memref<32x128xbf16, #tpu.memory_space<vmem>>, vector<32x128xbf16>
      %c0_6 = arith.constant 0 : index
      %c0_7 = arith.constant 0 : index
      %10 = vector.load %arg7[%c0_6, %c0_7] : memref<2x32xf32, #tpu.memory_space<vmem>>, vector<2x32xf32>
      %c0_8 = arith.constant 0 : index
      %c0_9 = arith.constant 0 : index
      %11 = vector.load %arg8[%c0_8, %c0_9] : memref<2x32xf32, #tpu.memory_space<vmem>>, vector<2x32xf32>
      %c0_10 = arith.constant 0 : index
      %c0_11 = arith.constant 0 : index
      %12 = vector.load %arg6[%c0_10, %c0_11] : memref<2x32xf32, #tpu.memory_space<vmem>>, vector<2x32xf32>
      %c0_i32_12 = arith.constant 0 : i32
      %13 = arith.addi %3, %c0_i32_12 : i32
      %14 = arith.index_cast %c0_i32_12 : i32 to index
      %c0_13 = arith.constant 0 : index
      %c0_14 = arith.constant 0 : index
      %15 = vector.load %arg3[%14, %c0_13, %c0_14] : memref<8x2x128xf32, #tpu.memory_space<vmem>>, vector<1x2x128xf32>
      %16 = vector.shape_cast %15 : vector<1x2x128xf32> to vector<2x128xf32>
      %17 = arith.truncf %10 : vector<2x32xf32> to vector<2x32xbf16>
      %cst = arith.constant dense<0.000000e+00> : vector<2x128xf32>
      %18 = tpu.matmul %17, %9, %cst {dimension_numbers = #tpu.dot_dimension_numbers<[1], [0], [0], [1], [0, 0, 1, 1], [], []>} : vector<2x32xbf16>, vector<32x128xbf16>, vector<2x128xf32> -> vector<2x128xf32>
      %19 = arith.addf %16, %18 : vector<2x128xf32>
      %20 = vector.extract_strided_slice %19 {offsets = [0, 0], sizes = [2, 32], strides = [1, 1]} : vector<2x128xf32> to vector<2x32xf32>
      %21 = arith.negf %20 : vector<2x32xf32>
      %22 = math.exp %21 : vector<2x32xf32>
      %cst_15 = arith.constant 1.000000e+00 : f32
      %23 = vector.broadcast %cst_15 : f32 to vector<2x32xf32>
      %24 = arith.addf %23, %22 : vector<2x32xf32>
      %25 = arith.divf %23, %24 : vector<2x32xf32>
      %26 = vector.extract_strided_slice %19 {offsets = [0, 32], sizes = [2, 32], strides = [1, 1]} : vector<2x128xf32> to vector<2x32xf32>
      %27 = arith.negf %26 : vector<2x32xf32>
      %28 = math.exp %27 : vector<2x32xf32>
      %cst_16 = arith.constant 1.000000e+00 : f32
      %29 = vector.broadcast %cst_16 : f32 to vector<2x32xf32>
      %30 = arith.addf %29, %28 : vector<2x32xf32>
      %31 = arith.divf %29, %30 : vector<2x32xf32>
      %32 = vector.extract_strided_slice %19 {offsets = [0, 64], sizes = [2, 32], strides = [1, 1]} : vector<2x128xf32> to vector<2x32xf32>
      %33 = math.tanh %32 : vector<2x32xf32>
      %34 = vector.extract_strided_slice %19 {offsets = [0, 96], sizes = [2, 32], strides = [1, 1]} : vector<2x128xf32> to vector<2x32xf32>
      %35 = arith.negf %34 : vector<2x32xf32>
      %36 = math.exp %35 : vector<2x32xf32>
      %cst_17 = arith.constant 1.000000e+00 : f32
      %37 = vector.broadcast %cst_17 : f32 to vector<2x32xf32>
      %38 = arith.addf %37, %36 : vector<2x32xf32>
      %39 = arith.divf %37, %38 : vector<2x32xf32>
      %40 = arith.mulf %31, %11 : vector<2x32xf32>
      %41 = arith.mulf %25, %33 : vector<2x32xf32>
      %42 = arith.addf %40, %41 : vector<2x32xf32>
      %43 = math.tanh %42 : vector<2x32xf32>
      %44 = arith.mulf %39, %43 : vector<2x32xf32>
      %45 = vector.broadcast %13 : i32 to vector<2x1xi32>
      %46 = arith.cmpi slt, %45, %8 : vector<2x1xi32>
      %47 = vector.shape_cast %46 : vector<2x1xi1> to vector<2x1xi1>
      %48 = vector.broadcast %47 : vector<2x1xi1> to vector<2x32xi1>
      %49 = arith.select %48, %42, %11 : vector<2x32xi1>, vector<2x32xf32>
      %50 = vector.shape_cast %46 : vector<2x1xi1> to vector<2x1xi1>
      %51 = vector.broadcast %50 : vector<2x1xi1> to vector<2x32xi1>
      %52 = arith.select %51, %44, %10 : vector<2x32xi1>, vector<2x32xf32>
      %c15_i32 = arith.constant 15 : i32
      %53 = arith.minsi %13, %c15_i32 : i32
      %54 = arith.index_cast %53 : i32 to index
      %55 = memref.load %arg2[%54] : memref<16xf32, #tpu.memory_space<smem>>
      %56 = vector.broadcast %55 : f32 to vector<2x32xf32>
      %57 = arith.mulf %56, %44 : vector<2x32xf32>
      %cst_18 = arith.constant 0.000000e+00 : f32
      %58 = vector.shape_cast %46 : vector<2x1xi1> to vector<2x1xi1>
      %59 = vector.broadcast %58 : vector<2x1xi1> to vector<2x32xi1>
      %60 = vector.broadcast %cst_18 : f32 to vector<2x32xf32>
      %61 = arith.select %59, %57, %60 : vector<2x32xi1>, vector<2x32xf32>
      %62 = arith.addf %12, %61 : vector<2x32xf32>
      %c1_i32 = arith.constant 1 : i32
      %63 = arith.addi %3, %c1_i32 : i32
      %64 = arith.index_cast %c1_i32 : i32 to index
      %c0_19 = arith.constant 0 : index
      %c0_20 = arith.constant 0 : index
      %65 = vector.load %arg3[%64, %c0_19, %c0_20] : memref<8x2x128xf32, #tpu.memory_space<vmem>>, vector<1x2x128xf32>
      %66 = vector.shape_cast %65 : vector<1x2x128xf32> to vector<2x128xf32>
      %67 = arith.truncf %52 : vector<2x32xf32> to vector<2x32xbf16>
      %cst_21 = arith.constant dense<0.000000e+00> : vector<2x128xf32>
      %68 = tpu.matmul %67, %9, %cst_21 {dimension_numbers = #tpu.dot_dimension_numbers<[1], [0], [0], [1], [0, 0, 1, 1], [], []>} : vector<2x32xbf16>, vector<32x128xbf16>, vector<2x128xf32> -> vector<2x128xf32>
      %69 = arith.addf %66, %68 : vector<2x128xf32>
      %70 = vector.extract_strided_slice %69 {offsets = [0, 0], sizes = [2, 32], strides = [1, 1]} : vector<2x128xf32> to vector<2x32xf32>
      %71 = arith.negf %70 : vector<2x32xf32>
      %72 = math.exp %71 : vector<2x32xf32>
      %cst_22 = arith.constant 1.000000e+00 : f32
      %73 = vector.broadcast %cst_22 : f32 to vector<2x32xf32>
      %74 = arith.addf %73, %72 : vector<2x32xf32>
      %75 = arith.divf %73, %74 : vector<2x32xf32>
      %76 = vector.extract_strided_slice %69 {offsets = [0, 32], sizes = [2, 32], strides = [1, 1]} : vector<2x128xf32> to vector<2x32xf32>
      %77 = arith.negf %76 : vector<2x32xf32>
      %78 = math.exp %77 : vector<2x32xf32>
      %cst_23 = arith.constant 1.000000e+00 : f32
      %79 = vector.broadcast %cst_23 : f32 to vector<2x32xf32>
      %80 = arith.addf %79, %78 : vector<2x32xf32>
      %81 = arith.divf %79, %80 : vector<2x32xf32>
      %82 = vector.extract_strided_slice %69 {offsets = [0, 64], sizes = [2, 32], strides = [1, 1]} : vector<2x128xf32> to vector<2x32xf32>
      %83 = math.tanh %82 : vector<2x32xf32>
      %84 = vector.extract_strided_slice %69 {offsets = [0, 96], sizes = [2, 32], strides = [1, 1]} : vector<2x128xf32> to vector<2x32xf32>
      %85 = arith.negf %84 : vector<2x32xf32>
      %86 = math.exp %85 : vector<2x32xf32>
      %cst_24 = arith.constant 1.000000e+00 : f32
      %87 = vector.broadcast %cst_24 : f32 to vector<2x32xf32>
      %88 = arith.addf %87, %86 : vector<2x32xf32>
      %89 = arith.divf %87, %88 : vector<2x32xf32>
      %90 = arith.mulf %81, %49 : vector<2x32xf32>
      %91 = arith.mulf %75, %83 : vector<2x32xf32>
      %92 = arith.addf %90, %91 : vector<2x32xf32>
      %93 = math.tanh %92 : vector<2x32xf32>
      %94 = arith.mulf %89, %93 : vector<2x32xf32>
      %95 = vector.broadcast %63 : i32 to vector<2x1xi32>
      %96 = arith.cmpi slt, %95, %8 : vector<2x1xi32>
      %97 = vector.shape_cast %96 : vector<2x1xi1> to vector<2x1xi1>
      %98 = vector.broadcast %97 : vector<2x1xi1> to vector<2x32xi1>
      %99 = arith.select %98, %92, %49 : vector<2x32xi1>, vector<2x32xf32>
      %100 = vector.shape_cast %96 : vector<2x1xi1> to vector<2x1xi1>
      %101 = vector.broadcast %100 : vector<2x1xi1> to vector<2x32xi1>
      %102 = arith.select %101, %94, %52 : vector<2x32xi1>, vector<2x32xf32>
      %c15_i32_25 = arith.constant 15 : i32
      %103 = arith.minsi %63, %c15_i32_25 : i32
      %104 = arith.index_cast %103 : i32 to index
      %105 = memref.load %arg2[%104] : memref<16xf32, #tpu.memory_space<smem>>
      %106 = vector.broadcast %105 : f32 to vector<2x32xf32>
      %107 = arith.mulf %106, %94 : vector<2x32xf32>
      %cst_26 = arith.constant 0.000000e+00 : f32
      %108 = vector.shape_cast %96 : vector<2x1xi1> to vector<2x1xi1>
      %109 = vector.broadcast %108 : vector<2x1xi1> to vector<2x32xi1>
      %110 = vector.broadcast %cst_26 : f32 to vector<2x32xf32>
      %111 = arith.select %109, %107, %110 : vector<2x32xi1>, vector<2x32xf32>
      %112 = arith.addf %62, %111 : vector<2x32xf32>
      %c2_i32 = arith.constant 2 : i32
      %113 = arith.addi %3, %c2_i32 : i32
      %114 = arith.index_cast %c2_i32 : i32 to index
      %c0_27 = arith.constant 0 : index
      %c0_28 = arith.constant 0 : index
      %115 = vector.load %arg3[%114, %c0_27, %c0_28] : memref<8x2x128xf32, #tpu.memory_space<vmem>>, vector<1x2x128xf32>
      %116 = vector.shape_cast %115 : vector<1x2x128xf32> to vector<2x128xf32>
      %117 = arith.truncf %102 : vector<2x32xf32> to vector<2x32xbf16>
      %cst_29 = arith.constant dense<0.000000e+00> : vector<2x128xf32>
      %118 = tpu.matmul %117, %9, %cst_29 {dimension_numbers = #tpu.dot_dimension_numbers<[1], [0], [0], [1], [0, 0, 1, 1], [], []>} : vector<2x32xbf16>, vector<32x128xbf16>, vector<2x128xf32> -> vector<2x128xf32>
      %119 = arith.addf %116, %118 : vector<2x128xf32>
      %120 = vector.extract_strided_slice %119 {offsets = [0, 0], sizes = [2, 32], strides = [1, 1]} : vector<2x128xf32> to vector<2x32xf32>
      %121 = arith.negf %120 : vector<2x32xf32>
      %122 = math.exp %121 : vector<2x32xf32>
      %cst_30 = arith.constant 1.000000e+00 : f32
      %123 = vector.broadcast %cst_30 : f32 to vector<2x32xf32>
      %124 = arith.addf %123, %122 : vector<2x32xf32>
      %125 = arith.divf %123, %124 : vector<2x32xf32>
      %126 = vector.extract_strided_slice %119 {offsets = [0, 32], sizes = [2, 32], strides = [1, 1]} : vector<2x128xf32> to vector<2x32xf32>
      %127 = arith.negf %126 : vector<2x32xf32>
      %128 = math.exp %127 : vector<2x32xf32>
      %cst_31 = arith.constant 1.000000e+00 : f32
      %129 = vector.broadcast %cst_31 : f32 to vector<2x32xf32>
      %130 = arith.addf %129, %128 : vector<2x32xf32>
      %131 = arith.divf %129, %130 : vector<2x32xf32>
      %132 = vector.extract_strided_slice %119 {offsets = [0, 64], sizes = [2, 32], strides = [1, 1]} : vector<2x128xf32> to vector<2x32xf32>
      %133 = math.tanh %132 : vector<2x32xf32>
      %134 = vector.extract_strided_slice %119 {offsets = [0, 96], sizes = [2, 32], strides = [1, 1]} : vector<2x128xf32> to vector<2x32xf32>
      %135 = arith.negf %134 : vector<2x32xf32>
      %136 = math.exp %135 : vector<2x32xf32>
      %cst_32 = arith.constant 1.000000e+00 : f32
      %137 = vector.broadcast %cst_32 : f32 to vector<2x32xf32>
      %138 = arith.addf %137, %136 : vector<2x32xf32>
      %139 = arith.divf %137, %138 : vector<2x32xf32>
      %140 = arith.mulf %131, %99 : vector<2x32xf32>
      %141 = arith.mulf %125, %133 : vector<2x32xf32>
      %142 = arith.addf %140, %141 : vector<2x32xf32>
      %143 = math.tanh %142 : vector<2x32xf32>
      %144 = arith.mulf %139, %143 : vector<2x32xf32>
      %145 = vector.broadcast %113 : i32 to vector<2x1xi32>
      %146 = arith.cmpi slt, %145, %8 : vector<2x1xi32>
      %147 = vector.shape_cast %146 : vector<2x1xi1> to vector<2x1xi1>
      %148 = vector.broadcast %147 : vector<2x1xi1> to vector<2x32xi1>
      %149 = arith.select %148, %142, %99 : vector<2x32xi1>, vector<2x32xf32>
      %150 = vector.shape_cast %146 : vector<2x1xi1> to vector<2x1xi1>
      %151 = vector.broadcast %150 : vector<2x1xi1> to vector<2x32xi1>
      %152 = arith.select %151, %144, %102 : vector<2x32xi1>, vector<2x32xf32>
      %c15_i32_33 = arith.constant 15 : i32
      %153 = arith.minsi %113, %c15_i32_33 : i32
      %154 = arith.index_cast %153 : i32 to index
      %155 = memref.load %arg2[%154] : memref<16xf32, #tpu.memory_space<smem>>
      %156 = vector.broadcast %155 : f32 to vector<2x32xf32>
      %157 = arith.mulf %156, %144 : vector<2x32xf32>
      %cst_34 = arith.constant 0.000000e+00 : f32
      %158 = vector.shape_cast %146 : vector<2x1xi1> to vector<2x1xi1>
      %159 = vector.broadcast %158 : vector<2x1xi1> to vector<2x32xi1>
      %160 = vector.broadcast %cst_34 : f32 to vector<2x32xf32>
      %161 = arith.select %159, %157, %160 : vector<2x32xi1>, vector<2x32xf32>
      %162 = arith.addf %112, %161 : vector<2x32xf32>
      %c3_i32 = arith.constant 3 : i32
      %163 = arith.addi %3, %c3_i32 : i32
      %164 = arith.index_cast %c3_i32 : i32 to index
      %c0_35 = arith.constant 0 : index
      %c0_36 = arith.constant 0 : index
      %165 = vector.load %arg3[%164, %c0_35, %c0_36] : memref<8x2x128xf32, #tpu.memory_space<vmem>>, vector<1x2x128xf32>
      %166 = vector.shape_cast %165 : vector<1x2x128xf32> to vector<2x128xf32>
      %167 = arith.truncf %152 : vector<2x32xf32> to vector<2x32xbf16>
      %cst_37 = arith.constant dense<0.000000e+00> : vector<2x128xf32>
      %168 = tpu.matmul %167, %9, %cst_37 {dimension_numbers = #tpu.dot_dimension_numbers<[1], [0], [0], [1], [0, 0, 1, 1], [], []>} : vector<2x32xbf16>, vector<32x128xbf16>, vector<2x128xf32> -> vector<2x128xf32>
      %169 = arith.addf %166, %168 : vector<2x128xf32>
      %170 = vector.extract_strided_slice %169 {offsets = [0, 0], sizes = [2, 32], strides = [1, 1]} : vector<2x128xf32> to vector<2x32xf32>
      %171 = arith.negf %170 : vector<2x32xf32>
      %172 = math.exp %171 : vector<2x32xf32>
      %cst_38 = arith.constant 1.000000e+00 : f32
      %173 = vector.broadcast %cst_38 : f32 to vector<2x32xf32>
      %174 = arith.addf %173, %172 : vector<2x32xf32>
      %175 = arith.divf %173, %174 : vector<2x32xf32>
      %176 = vector.extract_strided_slice %169 {offsets = [0, 32], sizes = [2, 32], strides = [1, 1]} : vector<2x128xf32> to vector<2x32xf32>
      %177 = arith.negf %176 : vector<2x32xf32>
      %178 = math.exp %177 : vector<2x32xf32>
      %cst_39 = arith.constant 1.000000e+00 : f32
      %179 = vector.broadcast %cst_39 : f32 to vector<2x32xf32>
      %180 = arith.addf %179, %178 : vector<2x32xf32>
      %181 = arith.divf %179, %180 : vector<2x32xf32>
      %182 = vector.extract_strided_slice %169 {offsets = [0, 64], sizes = [2, 32], strides = [1, 1]} : vector<2x128xf32> to vector<2x32xf32>
      %183 = math.tanh %182 : vector<2x32xf32>
      %184 = vector.extract_strided_slice %169 {offsets = [0, 96], sizes = [2, 32], strides = [1, 1]} : vector<2x128xf32> to vector<2x32xf32>
      %185 = arith.negf %184 : vector<2x32xf32>
      %186 = math.exp %185 : vector<2x32xf32>
      %cst_40 = arith.constant 1.000000e+00 : f32
      %187 = vector.broadcast %cst_40 : f32 to vector<2x32xf32>
      %188 = arith.addf %187, %186 : vector<2x32xf32>
      %189 = arith.divf %187, %188 : vector<2x32xf32>
      %190 = arith.mulf %181, %149 : vector<2x32xf32>
      %191 = arith.mulf %175, %183 : vector<2x32xf32>
      %192 = arith.addf %190, %191 : vector<2x32xf32>
      %193 = math.tanh %192 : vector<2x32xf32>
      %194 = arith.mulf %189, %193 : vector<2x32xf32>
      %195 = vector.broadcast %163 : i32 to vector<2x1xi32>
      %196 = arith.cmpi slt, %195, %8 : vector<2x1xi32>
      %197 = vector.shape_cast %196 : vector<2x1xi1> to vector<2x1xi1>
      %198 = vector.broadcast %197 : vector<2x1xi1> to vector<2x32xi1>
      %199 = arith.select %198, %192, %149 : vector<2x32xi1>, vector<2x32xf32>
      %200 = vector.shape_cast %196 : vector<2x1xi1> to vector<2x1xi1>
      %201 = vector.broadcast %200 : vector<2x1xi1> to vector<2x32xi1>
      %202 = arith.select %201, %194, %152 : vector<2x32xi1>, vector<2x32xf32>
      %c15_i32_41 = arith.constant 15 : i32
      %203 = arith.minsi %163, %c15_i32_41 : i32
      %204 = arith.index_cast %203 : i32 to index
      %205 = memref.load %arg2[%204] : memref<16xf32, #tpu.memory_space<smem>>
      %206 = vector.broadcast %205 : f32 to vector<2x32xf32>
      %207 = arith.mulf %206, %194 : vector<2x32xf32>
      %cst_42 = arith.constant 0.000000e+00 : f32
      %208 = vector.shape_cast %196 : vector<2x1xi1> to vector<2x1xi1>
      %209 = vector.broadcast %208 : vector<2x1xi1> to vector<2x32xi1>
      %210 = vector.broadcast %cst_42 : f32 to vector<2x32xf32>
      %211 = arith.select %209, %207, %210 : vector<2x32xi1>, vector<2x32xf32>
      %212 = arith.addf %162, %211 : vector<2x32xf32>
      %c4_i32 = arith.constant 4 : i32
      %213 = arith.addi %3, %c4_i32 : i32
      %214 = arith.index_cast %c4_i32 : i32 to index
      %c0_43 = arith.constant 0 : index
      %c0_44 = arith.constant 0 : index
      %215 = vector.load %arg3[%214, %c0_43, %c0_44] : memref<8x2x128xf32, #tpu.memory_space<vmem>>, vector<1x2x128xf32>
      %216 = vector.shape_cast %215 : vector<1x2x128xf32> to vector<2x128xf32>
      %217 = arith.truncf %202 : vector<2x32xf32> to vector<2x32xbf16>
      %cst_45 = arith.constant dense<0.000000e+00> : vector<2x128xf32>
      %218 = tpu.matmul %217, %9, %cst_45 {dimension_numbers = #tpu.dot_dimension_numbers<[1], [0], [0], [1], [0, 0, 1, 1], [], []>} : vector<2x32xbf16>, vector<32x128xbf16>, vector<2x128xf32> -> vector<2x128xf32>
      %219 = arith.addf %216, %218 : vector<2x128xf32>
      %220 = vector.extract_strided_slice %219 {offsets = [0, 0], sizes = [2, 32], strides = [1, 1]} : vector<2x128xf32> to vector<2x32xf32>
      %221 = arith.negf %220 : vector<2x32xf32>
      %222 = math.exp %221 : vector<2x32xf32>
      %cst_46 = arith.constant 1.000000e+00 : f32
      %223 = vector.broadcast %cst_46 : f32 to vector<2x32xf32>
      %224 = arith.addf %223, %222 : vector<2x32xf32>
      %225 = arith.divf %223, %224 : vector<2x32xf32>
      %226 = vector.extract_strided_slice %219 {offsets = [0, 32], sizes = [2, 32], strides = [1, 1]} : vector<2x128xf32> to vector<2x32xf32>
      %227 = arith.negf %226 : vector<2x32xf32>
      %228 = math.exp %227 : vector<2x32xf32>
      %cst_47 = arith.constant 1.000000e+00 : f32
      %229 = vector.broadcast %cst_47 : f32 to vector<2x32xf32>
      %230 = arith.addf %229, %228 : vector<2x32xf32>
      %231 = arith.divf %229, %230 : vector<2x32xf32>
      %232 = vector.extract_strided_slice %219 {offsets = [0, 64], sizes = [2, 32], strides = [1, 1]} : vector<2x128xf32> to vector<2x32xf32>
      %233 = math.tanh %232 : vector<2x32xf32>
      %234 = vector.extract_strided_slice %219 {offsets = [0, 96], sizes = [2, 32], strides = [1, 1]} : vector<2x128xf32> to vector<2x32xf32>
      %235 = arith.negf %234 : vector<2x32xf32>
      %236 = math.exp %235 : vector<2x32xf32>
      %cst_48 = arith.constant 1.000000e+00 : f32
      %237 = vector.broadcast %cst_48 : f32 to vector<2x32xf32>
      %238 = arith.addf %237, %236 : vector<2x32xf32>
      %239 = arith.divf %237, %238 : vector<2x32xf32>
      %240 = arith.mulf %231, %199 : vector<2x32xf32>
      %241 = arith.mulf %225, %233 : vector<2x32xf32>
      %242 = arith.addf %240, %241 : vector<2x32xf32>
      %243 = math.tanh %242 : vector<2x32xf32>
      %244 = arith.mulf %239, %243 : vector<2x32xf32>
      %245 = vector.broadcast %213 : i32 to vector<2x1xi32>
      %246 = arith.cmpi slt, %245, %8 : vector<2x1xi32>
      %247 = vector.shape_cast %246 : vector<2x1xi1> to vector<2x1xi1>
      %248 = vector.broadcast %247 : vector<2x1xi1> to vector<2x32xi1>
      %249 = arith.select %248, %242, %199 : vector<2x32xi1>, vector<2x32xf32>
      %250 = vector.shape_cast %246 : vector<2x1xi1> to vector<2x1xi1>
      %251 = vector.broadcast %250 : vector<2x1xi1> to vector<2x32xi1>
      %252 = arith.select %251, %244, %202 : vector<2x32xi1>, vector<2x32xf32>
      %c15_i32_49 = arith.constant 15 : i32
      %253 = arith.minsi %213, %c15_i32_49 : i32
      %254 = arith.index_cast %253 : i32 to index
      %255 = memref.load %arg2[%254] : memref<16xf32, #tpu.memory_space<smem>>
      %256 = vector.broadcast %255 : f32 to vector<2x32xf32>
      %257 = arith.mulf %256, %244 : vector<2x32xf32>
      %cst_50 = arith.constant 0.000000e+00 : f32
      %258 = vector.shape_cast %246 : vector<2x1xi1> to vector<2x1xi1>
      %259 = vector.broadcast %258 : vector<2x1xi1> to vector<2x32xi1>
      %260 = vector.broadcast %cst_50 : f32 to vector<2x32xf32>
      %261 = arith.select %259, %257, %260 : vector<2x32xi1>, vector<2x32xf32>
      %262 = arith.addf %212, %261 : vector<2x32xf32>
      %c5_i32 = arith.constant 5 : i32
      %263 = arith.addi %3, %c5_i32 : i32
      %264 = arith.index_cast %c5_i32 : i32 to index
      %c0_51 = arith.constant 0 : index
      %c0_52 = arith.constant 0 : index
      %265 = vector.load %arg3[%264, %c0_51, %c0_52] : memref<8x2x128xf32, #tpu.memory_space<vmem>>, vector<1x2x128xf32>
      %266 = vector.shape_cast %265 : vector<1x2x128xf32> to vector<2x128xf32>
      %267 = arith.truncf %252 : vector<2x32xf32> to vector<2x32xbf16>
      %cst_53 = arith.constant dense<0.000000e+00> : vector<2x128xf32>
      %268 = tpu.matmul %267, %9, %cst_53 {dimension_numbers = #tpu.dot_dimension_numbers<[1], [0], [0], [1], [0, 0, 1, 1], [], []>} : vector<2x32xbf16>, vector<32x128xbf16>, vector<2x128xf32> -> vector<2x128xf32>
      %269 = arith.addf %266, %268 : vector<2x128xf32>
      %270 = vector.extract_strided_slice %269 {offsets = [0, 0], sizes = [2, 32], strides = [1, 1]} : vector<2x128xf32> to vector<2x32xf32>
      %271 = arith.negf %270 : vector<2x32xf32>
      %272 = math.exp %271 : vector<2x32xf32>
      %cst_54 = arith.constant 1.000000e+00 : f32
      %273 = vector.broadcast %cst_54 : f32 to vector<2x32xf32>
      %274 = arith.addf %273, %272 : vector<2x32xf32>
      %275 = arith.divf %273, %274 : vector<2x32xf32>
      %276 = vector.extract_strided_slice %269 {offsets = [0, 32], sizes = [2, 32], strides = [1, 1]} : vector<2x128xf32> to vector<2x32xf32>
      %277 = arith.negf %276 : vector<2x32xf32>
      %278 = math.exp %277 : vector<2x32xf32>
      %cst_55 = arith.constant 1.000000e+00 : f32
      %279 = vector.broadcast %cst_55 : f32 to vector<2x32xf32>
      %280 = arith.addf %279, %278 : vector<2x32xf32>
      %281 = arith.divf %279, %280 : vector<2x32xf32>
      %282 = vector.extract_strided_slice %269 {offsets = [0, 64], sizes = [2, 32], strides = [1, 1]} : vector<2x128xf32> to vector<2x32xf32>
      %283 = math.tanh %282 : vector<2x32xf32>
      %284 = vector.extract_strided_slice %269 {offsets = [0, 96], sizes = [2, 32], strides = [1, 1]} : vector<2x128xf32> to vector<2x32xf32>
      %285 = arith.negf %284 : vector<2x32xf32>
      %286 = math.exp %285 : vector<2x32xf32>
      %cst_56 = arith.constant 1.000000e+00 : f32
      %287 = vector.broadcast %cst_56 : f32 to vector<2x32xf32>
      %288 = arith.addf %287, %286 : vector<2x32xf32>
      %289 = arith.divf %287, %288 : vector<2x32xf32>
      %290 = arith.mulf %281, %249 : vector<2x32xf32>
      %291 = arith.mulf %275, %283 : vector<2x32xf32>
      %292 = arith.addf %290, %291 : vector<2x32xf32>
      %293 = math.tanh %292 : vector<2x32xf32>
      %294 = arith.mulf %289, %293 : vector<2x32xf32>
      %295 = vector.broadcast %263 : i32 to vector<2x1xi32>
      %296 = arith.cmpi slt, %295, %8 : vector<2x1xi32>
      %297 = vector.shape_cast %296 : vector<2x1xi1> to vector<2x1xi1>
      %298 = vector.broadcast %297 : vector<2x1xi1> to vector<2x32xi1>
      %299 = arith.select %298, %292, %249 : vector<2x32xi1>, vector<2x32xf32>
      %300 = vector.shape_cast %296 : vector<2x1xi1> to vector<2x1xi1>
      %301 = vector.broadcast %300 : vector<2x1xi1> to vector<2x32xi1>
      %302 = arith.select %301, %294, %252 : vector<2x32xi1>, vector<2x32xf32>
      %c15_i32_57 = arith.constant 15 : i32
      %303 = arith.minsi %263, %c15_i32_57 : i32
      %304 = arith.index_cast %303 : i32 to index
      %305 = memref.load %arg2[%304] : memref<16xf32, #tpu.memory_space<smem>>
      %306 = vector.broadcast %305 : f32 to vector<2x32xf32>
      %307 = arith.mulf %306, %294 : vector<2x32xf32>
      %cst_58 = arith.constant 0.000000e+00 : f32
      %308 = vector.shape_cast %296 : vector<2x1xi1> to vector<2x1xi1>
      %309 = vector.broadcast %308 : vector<2x1xi1> to vector<2x32xi1>
      %310 = vector.broadcast %cst_58 : f32 to vector<2x32xf32>
      %311 = arith.select %309, %307, %310 : vector<2x32xi1>, vector<2x32xf32>
      %312 = arith.addf %262, %311 : vector<2x32xf32>
      %c6_i32 = arith.constant 6 : i32
      %313 = arith.addi %3, %c6_i32 : i32
      %314 = arith.index_cast %c6_i32 : i32 to index
      %c0_59 = arith.constant 0 : index
      %c0_60 = arith.constant 0 : index
      %315 = vector.load %arg3[%314, %c0_59, %c0_60] : memref<8x2x128xf32, #tpu.memory_space<vmem>>, vector<1x2x128xf32>
      %316 = vector.shape_cast %315 : vector<1x2x128xf32> to vector<2x128xf32>
      %317 = arith.truncf %302 : vector<2x32xf32> to vector<2x32xbf16>
      %cst_61 = arith.constant dense<0.000000e+00> : vector<2x128xf32>
      %318 = tpu.matmul %317, %9, %cst_61 {dimension_numbers = #tpu.dot_dimension_numbers<[1], [0], [0], [1], [0, 0, 1, 1], [], []>} : vector<2x32xbf16>, vector<32x128xbf16>, vector<2x128xf32> -> vector<2x128xf32>
      %319 = arith.addf %316, %318 : vector<2x128xf32>
      %320 = vector.extract_strided_slice %319 {offsets = [0, 0], sizes = [2, 32], strides = [1, 1]} : vector<2x128xf32> to vector<2x32xf32>
      %321 = arith.negf %320 : vector<2x32xf32>
      %322 = math.exp %321 : vector<2x32xf32>
      %cst_62 = arith.constant 1.000000e+00 : f32
      %323 = vector.broadcast %cst_62 : f32 to vector<2x32xf32>
      %324 = arith.addf %323, %322 : vector<2x32xf32>
      %325 = arith.divf %323, %324 : vector<2x32xf32>
      %326 = vector.extract_strided_slice %319 {offsets = [0, 32], sizes = [2, 32], strides = [1, 1]} : vector<2x128xf32> to vector<2x32xf32>
      %327 = arith.negf %326 : vector<2x32xf32>
      %328 = math.exp %327 : vector<2x32xf32>
      %cst_63 = arith.constant 1.000000e+00 : f32
      %329 = vector.broadcast %cst_63 : f32 to vector<2x32xf32>
      %330 = arith.addf %329, %328 : vector<2x32xf32>
      %331 = arith.divf %329, %330 : vector<2x32xf32>
      %332 = vector.extract_strided_slice %319 {offsets = [0, 64], sizes = [2, 32], strides = [1, 1]} : vector<2x128xf32> to vector<2x32xf32>
      %333 = math.tanh %332 : vector<2x32xf32>
      %334 = vector.extract_strided_slice %319 {offsets = [0, 96], sizes = [2, 32], strides = [1, 1]} : vector<2x128xf32> to vector<2x32xf32>
      %335 = arith.negf %334 : vector<2x32xf32>
      %336 = math.exp %335 : vector<2x32xf32>
      %cst_64 = arith.constant 1.000000e+00 : f32
      %337 = vector.broadcast %cst_64 : f32 to vector<2x32xf32>
      %338 = arith.addf %337, %336 : vector<2x32xf32>
      %339 = arith.divf %337, %338 : vector<2x32xf32>
      %340 = arith.mulf %331, %299 : vector<2x32xf32>
      %341 = arith.mulf %325, %333 : vector<2x32xf32>
      %342 = arith.addf %340, %341 : vector<2x32xf32>
      %343 = math.tanh %342 : vector<2x32xf32>
      %344 = arith.mulf %339, %343 : vector<2x32xf32>
      %345 = vector.broadcast %313 : i32 to vector<2x1xi32>
      %346 = arith.cmpi slt, %345, %8 : vector<2x1xi32>
      %347 = vector.shape_cast %346 : vector<2x1xi1> to vector<2x1xi1>
      %348 = vector.broadcast %347 : vector<2x1xi1> to vector<2x32xi1>
      %349 = arith.select %348, %342, %299 : vector<2x32xi1>, vector<2x32xf32>
      %350 = vector.shape_cast %346 : vector<2x1xi1> to vector<2x1xi1>
      %351 = vector.broadcast %350 : vector<2x1xi1> to vector<2x32xi1>
      %352 = arith.select %351, %344, %302 : vector<2x32xi1>, vector<2x32xf32>
      %c15_i32_65 = arith.constant 15 : i32
      %353 = arith.minsi %313, %c15_i32_65 : i32
      %354 = arith.index_cast %353 : i32 to index
      %355 = memref.load %arg2[%354] : memref<16xf32, #tpu.memory_space<smem>>
      %356 = vector.broadcast %355 : f32 to vector<2x32xf32>
      %357 = arith.mulf %356, %344 : vector<2x32xf32>
      %cst_66 = arith.constant 0.000000e+00 : f32
      %358 = vector.shape_cast %346 : vector<2x1xi1> to vector<2x1xi1>
      %359 = vector.broadcast %358 : vector<2x1xi1> to vector<2x32xi1>
      %360 = vector.broadcast %cst_66 : f32 to vector<2x32xf32>
      %361 = arith.select %359, %357, %360 : vector<2x32xi1>, vector<2x32xf32>
      %362 = arith.addf %312, %361 : vector<2x32xf32>
      %c7_i32 = arith.constant 7 : i32
      %363 = arith.addi %3, %c7_i32 : i32
      %364 = arith.index_cast %c7_i32 : i32 to index
      %c0_67 = arith.constant 0 : index
      %c0_68 = arith.constant 0 : index
      %365 = vector.load %arg3[%364, %c0_67, %c0_68] : memref<8x2x128xf32, #tpu.memory_space<vmem>>, vector<1x2x128xf32>
      %366 = vector.shape_cast %365 : vector<1x2x128xf32> to vector<2x128xf32>
      %367 = arith.truncf %352 : vector<2x32xf32> to vector<2x32xbf16>
      %cst_69 = arith.constant dense<0.000000e+00> : vector<2x128xf32>
      %368 = tpu.matmul %367, %9, %cst_69 {dimension_numbers = #tpu.dot_dimension_numbers<[1], [0], [0], [1], [0, 0, 1, 1], [], []>} : vector<2x32xbf16>, vector<32x128xbf16>, vector<2x128xf32> -> vector<2x128xf32>
      %369 = arith.addf %366, %368 : vector<2x128xf32>
      %370 = vector.extract_strided_slice %369 {offsets = [0, 0], sizes = [2, 32], strides = [1, 1]} : vector<2x128xf32> to vector<2x32xf32>
      %371 = arith.negf %370 : vector<2x32xf32>
      %372 = math.exp %371 : vector<2x32xf32>
      %cst_70 = arith.constant 1.000000e+00 : f32
      %373 = vector.broadcast %cst_70 : f32 to vector<2x32xf32>
      %374 = arith.addf %373, %372 : vector<2x32xf32>
      %375 = arith.divf %373, %374 : vector<2x32xf32>
      %376 = vector.extract_strided_slice %369 {offsets = [0, 32], sizes = [2, 32], strides = [1, 1]} : vector<2x128xf32> to vector<2x32xf32>
      %377 = arith.negf %376 : vector<2x32xf32>
      %378 = math.exp %377 : vector<2x32xf32>
      %cst_71 = arith.constant 1.000000e+00 : f32
      %379 = vector.broadcast %cst_71 : f32 to vector<2x32xf32>
      %380 = arith.addf %379, %378 : vector<2x32xf32>
      %381 = arith.divf %379, %380 : vector<2x32xf32>
      %382 = vector.extract_strided_slice %369 {offsets = [0, 64], sizes = [2, 32], strides = [1, 1]} : vector<2x128xf32> to vector<2x32xf32>
      %383 = math.tanh %382 : vector<2x32xf32>
      %384 = vector.extract_strided_slice %369 {offsets = [0, 96], sizes = [2, 32], strides = [1, 1]} : vector<2x128xf32> to vector<2x32xf32>
      %385 = arith.negf %384 : vector<2x32xf32>
      %386 = math.exp %385 : vector<2x32xf32>
      %cst_72 = arith.constant 1.000000e+00 : f32
      %387 = vector.broadcast %cst_72 : f32 to vector<2x32xf32>
      %388 = arith.addf %387, %386 : vector<2x32xf32>
      %389 = arith.divf %387, %388 : vector<2x32xf32>
      %390 = arith.mulf %381, %349 : vector<2x32xf32>
      %391 = arith.mulf %375, %383 : vector<2x32xf32>
      %392 = arith.addf %390, %391 : vector<2x32xf32>
      %393 = math.tanh %392 : vector<2x32xf32>
      %394 = arith.mulf %389, %393 : vector<2x32xf32>
      %395 = vector.broadcast %363 : i32 to vector<2x1xi32>
      %396 = arith.cmpi slt, %395, %8 : vector<2x1xi32>
      %397 = vector.shape_cast %396 : vector<2x1xi1> to vector<2x1xi1>
      %398 = vector.broadcast %397 : vector<2x1xi1> to vector<2x32xi1>
      %399 = arith.select %398, %392, %349 : vector<2x32xi1>, vector<2x32xf32>
      %400 = vector.shape_cast %396 : vector<2x1xi1> to vector<2x1xi1>
      %401 = vector.broadcast %400 : vector<2x1xi1> to vector<2x32xi1>
      %402 = arith.select %401, %394, %352 : vector<2x32xi1>, vector<2x32xf32>
      %c15_i32_73 = arith.constant 15 : i32
      %403 = arith.minsi %363, %c15_i32_73 : i32
      %404 = arith.index_cast %403 : i32 to index
      %405 = memref.load %arg2[%404] : memref<16xf32, #tpu.memory_space<smem>>
      %406 = vector.broadcast %405 : f32 to vector<2x32xf32>
      %407 = arith.mulf %406, %394 : vector<2x32xf32>
      %cst_74 = arith.constant 0.000000e+00 : f32
      %408 = vector.shape_cast %396 : vector<2x1xi1> to vector<2x1xi1>
      %409 = vector.broadcast %408 : vector<2x1xi1> to vector<2x32xi1>
      %410 = vector.broadcast %cst_74 : f32 to vector<2x32xf32>
      %411 = arith.select %409, %407, %410 : vector<2x32xi1>, vector<2x32xf32>
      %412 = arith.addf %362, %411 : vector<2x32xf32>
      %c8_i32_75 = arith.constant 8 : i32
      %c0_76 = arith.constant 0 : index
      %c0_77 = arith.constant 0 : index
      %413 = vector.load %arg7[%c0_76, %c0_77] : memref<2x32xf32, #tpu.memory_space<vmem>>, vector<2x32xf32>
      tpu.vector_store %arg7[%c0_76, %c0_77], %402 {strides = array<i32>} : memref<2x32xf32, #tpu.memory_space<vmem>>, vector<2x32xf32>,
      %c0_78 = arith.constant 0 : index
      %c0_79 = arith.constant 0 : index
      %414 = vector.load %arg8[%c0_78, %c0_79] : memref<2x32xf32, #tpu.memory_space<vmem>>, vector<2x32xf32>
      tpu.vector_store %arg8[%c0_78, %c0_79], %399 {strides = array<i32>} : memref<2x32xf32, #tpu.memory_space<vmem>>, vector<2x32xf32>,
      %c0_80 = arith.constant 0 : index
      %c0_81 = arith.constant 0 : index
      %415 = vector.load %arg6[%c0_80, %c0_81] : memref<2x32xf32, #tpu.memory_space<vmem>>, vector<2x32xf32>
      tpu.vector_store %arg6[%c0_80, %c0_81], %412 {strides = array<i32>} : memref<2x32xf32, #tpu.memory_space<vmem>>, vector<2x32xf32>,
    } else {
    }
    return
  }
  func.func @transform_0(%arg0: i32, %arg1: memref<2xi32, #tpu.memory_space<smem>>, %arg2: memref<16xf32, #tpu.memory_space<smem>>) -> (i32, i32, i32) {
    %c0_i32 = arith.constant 0 : i32
    %c0_i32_0 = arith.constant 0 : i32
    %c0_i32_1 = arith.constant 0 : i32
    return %arg0, %c0_i32, %c0_i32_0 : i32, i32, i32
  }
  func.func @transform_1(%arg0: i32, %arg1: memref<2xi32, #tpu.memory_space<smem>>, %arg2: memref<16xf32, #tpu.memory_space<smem>>) -> (i32, i32) {
    %c0_i32 = arith.constant 0 : i32
    %c0_i32_0 = arith.constant 0 : i32
    %c0_i32_1 = arith.constant 0 : i32
    return %c0_i32, %c0_i32_0 : i32, i32
  }
  func.func @transform_2(%arg0: i32, %arg1: memref<2xi32, #tpu.memory_space<smem>>, %arg2: memref<16xf32, #tpu.memory_space<smem>>) -> (i32, i32) {
    %c0_i32 = arith.constant 0 : i32
    %c0_i32_0 = arith.constant 0 : i32
    %c0_i32_1 = arith.constant 0 : i32
    return %c0_i32, %c0_i32_0 : i32, i32
  }
  func.func @transform_3(%arg0: i32, %arg1: memref<2xi32, #tpu.memory_space<smem>>, %arg2: memref<16xf32, #tpu.memory_space<smem>>) -> (i32, i32) {
    %c0_i32 = arith.constant 0 : i32
    %c0_i32_0 = arith.constant 0 : i32
    %c0_i32_1 = arith.constant 0 : i32
    return %c0_i32, %c0_i32_0 : i32, i32
  }
}

</mosaic_0001>

<llo_original>
// kernel: tpu_custom_call.1
$region0: #{tpu_custom_call.1}
  #allocation0 [shape = 'u32[]', space=smem, size = 0x4, offset = 0x4, fixed_abs, tag = 'smem constant byte address 0x4 - core index']
  #allocation1 [shape = 'u32[144,128]{1,0:T(1,128)}', space=vmem, size = 0x12000, scoped, tag = 'internal scratch']
  #allocation2 [shape = 'f32[2,32]{1,0:T(2,128)}', space=vmem, size = 0x400, scoped, tag = 'scratch operand']
  #allocation3 [shape = 'f32[2,32]{1,0:T(2,128)}', space=vmem, size = 0x400, scoped, tag = 'scratch operand']
  #allocation4 [shape = 's32[1]{0}', space=sflag, size = 0x4, scoped, tag = 'scoped memory for tpu_custom_call.1']
  #allocation5 [shape = 'u8[512]{0}', space=smem, size = 0x200, scoped, tag = 'prefetched SMEM operand 0']
  #allocation6 [shape = 'u8[512]{0}', space=smem, size = 0x200, scoped, tag = 'prefetched SMEM operand 1']
  %s0 = inlined_call_operand.vmem [shape: s32[2], index: 0, kind: input, shape index: {}]
  %s1 = inlined_call_operand.vmem [shape: f32[16], index: 1, kind: input, shape index: {}]
  %s2 = inlined_call_operand.hbm [shape: f32[16,2,128], index: 2, kind: input, shape index: {}]
  %s3 = inlined_call_operand.vmem [shape: s32[2,1], index: 3, kind: input, shape index: {}]
  %s4 = inlined_call_operand.vmem [shape: bf16[32,128], index: 4, kind: input, shape index: {}]
  %s5 = inlined_call_operand.hbm [shape: f32[2,32], index: 5, kind: output, shape index: {}]
  %s6 = sld [smem:[#allocation0]]
  $region57: #{tpu_custom_call.1} parent=0
    _
  %s8 = ssub.s32 1, %s6
  %s9 = scalar_select 0, %s8, %s6
  %s10 = sshll.u32 %s0, 4
  %s11 = int_to_ptr.vmem [resolvable:$true] %s10
  %13 = dma.vmem_to_smem %s11, 16, [#allocation5], [#allocation4]
  %s14 = sshll.u32 %s1, 4
  %s15 = int_to_ptr.vmem [resolvable:$true] %s14
  %17 = dma.vmem_to_smem %s15, 16, [#allocation6], [#allocation4]
  %18 = dma.done [#allocation4], 32
  %19 = sfence
  $region1: #{tpu_custom_call.1} parent=0
    #allocation7 [shape = 'u8[16384]{0}', space=vmem, size = 0x4000, scoped, tag = 'input window, operand 2']
    #allocation8 [shape = 's32[2]{0}', space=sflag, size = 0x8, scoped, tag = 'scoped memory for tpu_custom_call.1']
    #allocation9 [shape = 's32[2]{0}', space=sflag, size = 0x8, scoped, tag = 'scoped memory for tpu_custom_call.1']
    #allocation10 [shape = 'u8[1024]{0}', space=vmem, size = 0x400, scoped, tag = 'output window, operand 0, single buffered']
    %20 = vsyncpa [#allocation8], 0
    %s21 = scalar_lea.sflag [#allocation8], 1
    %22 = vsyncpa %s21, 0
    %23 = vsyncpa [#allocation9], 0
    loop: start=0, step=1, limit=4
    $region2: #{tpu_custom_call.1} parent=1 // loop_pre_header
      _
    $region3: #{tpu_custom_call.1} parent=1 // loop_header
      %s25 = sphi 0, %s29
      %p26 = scmp.ge.s32.totalorder %s25, 4
      %s35 = sphi 0, %s37
      %s38 = sphi 0, %s35
      %s39 = sphi 0, %s38
      %s55 = sphi 0, %s39
      %s59 = sphi 0, %s59
      %s61 = sphi 0, %s59
      %s62 = sphi 0, %s61
      %s76 = sphi 0, %s62
      %s80 = sphi 0, %s80
      %s82 = sphi 0, %s80
      %s83 = sphi 0, %s82
      %s97 = sphi 0, %s83
      %s101 = sphi 0, %s101
      %s103 = sphi 0, %s101
      %s104 = sphi 0, %s103
      %s118 = sphi 0, %s104
    $region4: #{tpu_custom_call.1} parent=1 // loop_header_branch
      %28 = sbr.rel (%p26) target = $region8
    $region5: #{tpu_custom_call.1} parent=1 // loop_body
      %s30 = ssub.s32 %s25, 1
      %s31 = ssub.s32 %s25, 2
      %s32 = sadd.s32 %s25, 1
      %s33 = ssub.s32 %s25, %s32
      %p34 = scmp.eq.s32.totalorder %s33, 0
      %s36 = sadd.s32 %s35, 1
      %s37 = scalar_select %p34, %s35, %s36
      %p40 = pneg %p34
      %p41 = scmp.eq.s32.totalorder %s25, 1
      %p42 = por %p40, %p41
      %p43 = scmp.ne.s32.totalorder %s35, %s38
      %p44 = scmp.eq.s32.totalorder %s25, 0
      %p45 = por %p43, %p44
      %p46 = scmp.ne.s32.totalorder %s35, %s38
      %p47 = scmp.eq.s32.totalorder %s30, 1
      %p48 = por %p46, %p47
      %p49 = scmp.ne.s32.totalorder %s38, %s39
      %p50 = scmp.eq.s32.totalorder %s30, 0
      %p51 = por %p49, %p50
      %p52 = scmp.ne.s32.totalorder %s38, %s39
      %p53 = scmp.eq.s32.totalorder %s31, 1
      %p54 = por %p52, %p53
      %p56 = scmp.ne.s32.totalorder %s39, %s55
      %p57 = scmp.eq.s32.totalorder %s31, 0
      %p58 = por %p56, %p57
      %s60 = sadd.s32 %s59, 1
      %p63 = scmp.eq.s32.totalorder %s25, 1
      %p64 = scmp.ne.s32.totalorder %s59, %s61
      %p65 = scmp.eq.s32.totalorder %s25, 0
      %p66 = por %p64, %p65
      %p67 = scmp.ne.s32.totalorder %s59, %s61
      %p68 = scmp.eq.s32.totalorder %s30, 1
      %p69 = por %p67, %p68
      %p70 = scmp.ne.s32.totalorder %s61, %s62
      %p71 = scmp.eq.s32.totalorder %s30, 0
      %p72 = por %p70, %p71
      %p73 = scmp.ne.s32.totalorder %s61, %s62
      %p74 = scmp.eq.s32.totalorder %s31, 1
      %p75 = por %p73, %p74
      %p77 = scmp.ne.s32.totalorder %s62, %s76
      %p78 = scmp.eq.s32.totalorder %s31, 0
      %p79 = por %p77, %p78
      %s81 = sadd.s32 %s80, 1
      %p84 = scmp.eq.s32.totalorder %s25, 1
      %p85 = scmp.ne.s32.totalorder %s80, %s82
      %p86 = scmp.eq.s32.totalorder %s25, 0
      %p87 = por %p85, %p86
      %p88 = scmp.ne.s32.totalorder %s80, %s82
      %p89 = scmp.eq.s32.totalorder %s30, 1
      %p90 = por %p88, %p89
      %p91 = scmp.ne.s32.totalorder %s82, %s83
      %p92 = scmp.eq.s32.totalorder %s30, 0
      %p93 = por %p91, %p92
      %p94 = scmp.ne.s32.totalorder %s82, %s83
      %p95 = scmp.eq.s32.totalorder %s31, 1
      %p96 = por %p94, %p95
      %p98 = scmp.ne.s32.totalorder %s83, %s97
      %p99 = scmp.eq.s32.totalorder %s31, 0
      %p100 = por %p98, %p99
      %s102 = sadd.s32 %s101, 1
      %p105 = scmp.eq.s32.totalorder %s25, 1
      %p106 = scmp.ne.s32.totalorder %s101, %s103
      %p107 = scmp.eq.s32.totalorder %s25, 0
      %p108 = por %p106, %p107
      %p109 = scmp.ne.s32.totalorder %s101, %s103
      %p110 = scmp.eq.s32.totalorder %s30, 1
      %p111 = por %p109, %p110
      %p112 = scmp.ne.s32.totalorder %s103, %s104
      %p113 = scmp.eq.s32.totalorder %s30, 0
      %p114 = por %p112, %p113
      %p115 = scmp.ne.s32.totalorder %s103, %s104
      %p116 = scmp.eq.s32.totalorder %s31, 1
      %p117 = por %p115, %p116
      %p119 = scmp.ne.s32.totalorder %s104, %s118
      %p120 = scmp.eq.s32.totalorder %s31, 0
      %p121 = por %p119, %p120
      %p122 = scmp.le.s32.totalorder 1, %s25
      %p123 = scmp.lt.s32.totalorder %s25, 3
      %p124 = pnand %p122, %p123
      %p125 = pneg %p124
      // Predicated region
      $region9: #{tpu_custom_call.1} parent=5 // pred_check
        _
      $region10: #{tpu_custom_call.1} parent=5 // pred_check_branch
        %127 = sbr.rel (%p124) target = $region12
      $region11: #{tpu_custom_call.1} parent=5 // pred_region
        %s128 = ssub.s32 %s25, 1
        // Predicated region
        $region13: #{tpu_custom_call.1} parent=11 // pred_check
          %p129 = pneg %p72
        $region14: #{tpu_custom_call.1} parent=11 // pred_check_branch
          %131 = sbr.rel (%p129) target = $region16
        $region15: #{tpu_custom_call.1} parent=11 // pred_region
          _
        $region16: #{tpu_custom_call.1} parent=11 // pred_fallthru
          _
        // Predicated region
        $region17: #{tpu_custom_call.1} parent=11 // pred_check
          %p132 = pneg %p93
        $region18: #{tpu_custom_call.1} parent=11 // pred_check_branch
          %134 = sbr.rel (%p132) target = $region20
        $region19: #{tpu_custom_call.1} parent=11 // pred_region
          _
        $region20: #{tpu_custom_call.1} parent=11 // pred_fallthru
          _
      $region12: #{tpu_custom_call.1} parent=5 // pred_fallthru
        _
      %p135 = scmp.lt.s32.totalorder %s25, 2
      // Predicated region
      $region21: #{tpu_custom_call.1} parent=5 // pred_check
        %p136 = pneg %p135
      $region22: #{tpu_custom_call.1} parent=5 // pred_check_branch
        %138 = sbr.rel (%p136) target = $region24
      $region23: #{tpu_custom_call.1} parent=5 // pred_region
        // Predicated region
        $region25: #{tpu_custom_call.1} parent=23 // pred_check
          %p139 = pneg %p45
        $region26: #{tpu_custom_call.1} parent=23 // pred_check_branch
          %141 = sbr.rel (%p139) target = $region28
        $region27: #{tpu_custom_call.1} parent=23 // pred_region
          %s142 = sand.u32 %s35, 1
          %s143 = scalar_lea.sflag [#allocation8], %s142
          %s144 = sand.u32 %s35, 1
          %s145 = smul.addr %s144, 16
          %s146 = scalar_lea.vmem [#allocation7], %s145
          %s147 = smul.u32 8, %s25
          %s149 = ssub.s32 256, 256
          %150 = vsyncadd %s143, %s149
          %s151 = smul.addr %s147, 32
          %s152 = scalar_lea.hbm %s2, %s151
          %s153 = sshll.u32 %s146, 4
          %s154 = int_to_ptr.vmem [resolvable:$true] %s153
          %159 = dma.hbm_to_vmem [thread:$0]  %s152, 256, %s154, %s143, 32, 32, 2
        $region28: #{tpu_custom_call.1} parent=23 // pred_fallthru
          _
      $region24: #{tpu_custom_call.1} parent=5 // pred_fallthru
        _
      %p160 = scmp.le.s32.totalorder 1, %s25
      %p161 = scmp.lt.s32.totalorder %s25, 3
      %p162 = pnand %p160, %p161
      %p163 = pneg %p162
      // Predicated region
      $region29: #{tpu_custom_call.1} parent=5 // pred_check
        _
      $region30: #{tpu_custom_call.1} parent=5 // pred_check_branch
        %165 = sbr.rel (%p162) target = $region32
      $region31: #{tpu_custom_call.1} parent=5 // pred_region
        %s166 = ssub.s32 %s25, 1
        %s167 = sand.u32 %s38, 1
        %s168 = scalar_lea.sflag [#allocation8], %s167
        %s169 = sand.u32 %s38, 1
        %s170 = smul.addr %s169, 16
        %s171 = scalar_lea.vmem [#allocation7], %s170
        // Predicated region
        $region33: #{tpu_custom_call.1} parent=31 // pred_check
          %p172 = pneg %p51
        $region34: #{tpu_custom_call.1} parent=31 // pred_check_branch
          %174 = sbr.rel (%p172) target = $region36
        $region35: #{tpu_custom_call.1} parent=31 // pred_region
          %175 = dma.done %s168, 256
        $region36: #{tpu_custom_call.1} parent=31 // pred_fallthru
          _
        %s176 = sand.u32 %s38, 1
        %s177 = scalar_lea.sflag [#allocation8], %s176
        %s178 = sand.u32 %s38, 1
        %s179 = smul.addr %s178, 16
        %s180 = scalar_lea.vmem [#allocation7], %s179
        %p181 = pneg %p51
        %p182 = pneg %p48
        %p183 = pneg %p72
        %p184 = pneg %p69
        %p185 = pneg %p93
        %p186 = pneg %p90
        %p187 = pneg %p114
        %p188 = pneg %p111
        %s189 = smul.u32 8, %s30
        %p191 = scmp.eq.s32.totalorder %s30, 0
        // Predicated region
        $region37: #{tpu_custom_call.1} parent=31 // pred_check
          %p192 = pneg %p191
        $region38: #{tpu_custom_call.1} parent=31 // pred_check_branch
          %194 = sbr.rel (%p192) target = $region40
        $region39: #{tpu_custom_call.1} parent=31 // pred_region
          %vm195 = vcmask 254976
          %196 = vst.msk [vmem:[#allocation2] sm:$0x3] %vm195, 0.0
          %197 = vst.msk [vmem:[#allocation3] sm:$0x3] %vm195, 0.0
          %198 = vst.msk [vmem:[#allocation10] sm:$0x3] %vm195, 0.0
        $region40: #{tpu_custom_call.1} parent=31 // pred_fallthru
          _
        %s199 = smul.u32 %s30, 8
        %s200 = sld [smem:[#allocation5]]
        %p201 = scmp.lt.s32.totalorder %s199, %s200
        // Predicated region
        $region41: #{tpu_custom_call.1} parent=31 // pred_check
          %p202 = pneg %p201
        $region42: #{tpu_custom_call.1} parent=31 // pred_check_branch
          %204 = sbr.rel (%p202) target = $region44
        $region43: #{tpu_custom_call.1} parent=31 // pred_region
          %v205 = vld [vmem:[%s3] sm:$0x3]
          %v206 = vld [vmem:[%s4] sm:$0xf]
          %v207 = vld [vmem:[%s4 + $0x4] sm:$0xf]
          %v208 = vld [vmem:[%s4 + $0x8] sm:$0xf]
          %v209 = vld [vmem:[%s4 + $0xc] sm:$0xf]
          %v210 = vld [vmem:[#allocation2] sm:$0x3]
          %v211 = vld [vmem:[#allocation3] sm:$0x3]
          %v212 = vld [vmem:[#allocation10] sm:$0x3]
          %v213 = vld [vmem:[%s171] sm:$0x3]
          %v214 = vpack.c.bf16 %v210, %v210
          %v219 = vunpack.c.l.b16 %v206
          %v220 = vunpack.c.l.b16 %v207
          %v221 = vunpack.c.l.b16 %v208
          %v222 = vunpack.c.l.b16 %v209
          %v223 = vpack.c.b16 %v220, %v219
          %v224 = vpack.c.b16 %v222, %v221
          %vm227 = vcmask 261120
          %v229 = vsel %vm227, %v214, 0
          %231 = vmatprep.subr.bf16.mxu0 0
          %232 = vmatpush1.bf16.msra.mxu0 %v223
          %233 = vmatprep.subr.bf16.mxu0 0
          %234 = vmatpush1.bf16.msra.mxu0 %v224
          %235 = vmatprep.subr.bf16.mxu0 0
          %236 = vmatpush1.bf16.msra.mxu0 0
          %237 = vmatprep.subr.bf16.mxu0 0
          %238 = vmatpush1.bf16.msra.mxu0 0
          %239 = vmatprep.subr.bf16.mxu0 0
          %240 = vmatpush1.bf16.msra.mxu0 0
          %241 = vmatprep.subr.bf16.mxu0 0
          %242 = vmatpush1.bf16.msra.mxu0 0
          %243 = vmatprep.subr.bf16.mxu0 0
          %244 = vmatpush1.bf16.msra.mxu0 0
          %245 = vmatprep.subr.bf16.mxu0 0
          %246 = vmatpush1.bf16.msra.mxu0 0
          %247 = vmatprep.subr.bf16.mxu0 0
          %248 = vmatpush1.bf16.msra.mxu0 0
          %249 = vmatprep.subr.bf16.mxu0 0
          %250 = vmatpush1.bf16.msra.mxu0 0
          %251 = vmatprep.subr.bf16.mxu0 0
          %252 = vmatpush1.bf16.msra.mxu0 0
          %253 = vmatprep.subr.bf16.mxu0 0
          %254 = vmatpush1.bf16.msra.mxu0 0
          %255 = vmatprep.subr.bf16.mxu0 0
          %256 = vmatpush1.bf16.msra.mxu0 0
          %257 = vmatprep.subr.bf16.mxu0 0
          %258 = vmatpush1.bf16.msra.mxu0 0
          %259 = vmatprep.subr.bf16.mxu0 0
          %260 = vmatpush1.bf16.msra.mxu0 0
          %261 = vmatprep.subr.bf16.mxu0 0
          %262 = vmatpush1.bf16.msra.mxu0 0
          %263 = vmatprep.mubr.bf16.mxu0 0
          %264 = vmatmul.mubr.bf16.gmra.mrb[0].mxu0 %v229
          %v265 = vpop.f32.mrb[0].mxu0
          %v266 = vadd.f32 0.0, %v265
          %v267 = vpop.f32.mrb[0].mxu0
          %v268 = vpop.f32.mrb[0].mxu0
          %v269 = vpop.f32.mrb[0].mxu0
          %270 = vdwg.mxu0
          %v271 = vadd.f32 %v213, %v266
          %v272 = vxor.u32 %v271, 2147483648
          %v273 = vmul.f32 %v272, 1.442695
          %v274 = vpow.pop %v273
          %v275 = vadd.f32 %v274, 1.0
          %v276 = vrcp.pop %v275
          %v277 = vmul.f32 1.0, %v276
          %v278 = vtanh.pop %v271
          %280 = vrot.lane.b32.xlu0 %v211, 32
          %v281 = vpop.permute.xlu0 %280
          %v283 = vmul.f32 %v277, %v281
          %285 = vrot.lane.b32.xlu0 %v278, 64
          %v286 = vpop.permute.xlu0 %285
          %v288 = vmul.f32 %v277, %v286
          %290 = vrot.lane.b32.xlu0 %v288, 32
          %v291 = vpop.permute.xlu0 %290
          %v293 = vadd.f32 %v283, %v291
          %v294 = vtanh.pop %v293
          %296 = vrot.lane.b32.xlu0 %v294, 64
          %v297 = vpop.permute.xlu0 %296
          %v299 = vmul.f32 %v277, %v297
          %v300 = vstv %s199
          %vm301 = vcmp.lt.s32.totalorder %v300, %v205
          %v302 = vsel %vm301, 1, 0
          %303 = vset.pattern.permute.xlu0 0
          %304 = vperm.xlu0 %303, %v302
          %v305 = vpop.permute.xlu0 %304
          %vm306 = vcmp.eq.s32.totalorder %v305, 1
          %v307 = vsel %vm306, %v293, %v281
          %309 = vrot.lane.b32.xlu0 %v210, 96
          %v310 = vpop.permute.xlu0 %309
          %v312 = vsel %vm306, %v299, %v310
          %p313 = scmp.lt.s32.totalorder %s199, 15
          %s314 = scalar_select %p313, %s199, 15
          %s315 = sld [smem:[#allocation6 + %s314]]
          %v316 = vstv %s315
          %v317 = vmul.f32 %v316, %v299
          %v318 = vsel %vm306, %v317, 0.0
          %320 = vrot.lane.b32.xlu0 %v318, 32
          %v321 = vpop.permute.xlu0 %320
          %v323 = vadd.f32 %v212, %v321
          %s324 = sadd.s32 %s199, 1
          %s325 = scalar_lea.vmem %s171, 2 [#allocation7]
          %v326 = vld [vmem:[%s325] sm:$0x3]
          %v327 = vpack.c.bf16 %v312, %v312
          %329 = vrot.lane.b32.xlu0 %v327, 32
          %v330 = vpop.permute.xlu0 %329
          %v332 = vsel %vm227, %v330, 0
          %334 = vmatprep.subr.bf16.mxu0 0
          %335 = vmatpush1.bf16.msra.mxu0 %v223
          %336 = vmatprep.subr.bf16.mxu0 0
          %337 = vmatpush1.bf16.msra.mxu0 %v224
          %338 = vmatprep.subr.bf16.mxu0 0
          %339 = vmatpush1.bf16.msra.mxu0 0
          %340 = vmatprep.subr.bf16.mxu0 0
          %341 = vmatpush1.bf16.msra.mxu0 0
          %342 = vmatprep.subr.bf16.mxu0 0
          %343 = vmatpush1.bf16.msra.mxu0 0
          %344 = vmatprep.subr.bf16.mxu0 0
          %345 = vmatpush1.bf16.msra.mxu0 0
          %346 = vmatprep.subr.bf16.mxu0 0
          %347 = vmatpush1.bf16.msra.mxu0 0
          %348 = vmatprep.subr.bf16.mxu0 0
          %349 = vmatpush1.bf16.msra.mxu0 0
          %350 = vmatprep.subr.bf16.mxu0 0
          %351 = vmatpush1.bf16.msra.mxu0 0
          %352 = vmatprep.subr.bf16.mxu0 0
          %353 = vmatpush1.bf16.msra.mxu0 0
          %354 = vmatprep.subr.bf16.mxu0 0
          %355 = vmatpush1.bf16.msra.mxu0 0
          %356 = vmatprep.subr.bf16.mxu0 0
          %357 = vmatpush1.bf16.msra.mxu0 0
          %358 = vmatprep.subr.bf16.mxu0 0
          %359 = vmatpush1.bf16.msra.mxu0 0
          %360 = vmatprep.subr.bf16.mxu0 0
          %361 = vmatpush1.bf16.msra.mxu0 0
          %362 = vmatprep.subr.bf16.mxu0 0
          %363 = vmatpush1.bf16.msra.mxu0 0
          %364 = vmatprep.subr.bf16.mxu0 0
          %365 = vmatpush1.bf16.msra.mxu0 0
          %366 = vmatprep.mubr.bf16.mxu0 0
          %367 = vmatmul.mubr.bf16.gmra.mrb[0].mxu0 %v332
          %v368 = vpop.f32.mrb[0].mxu0
          %v369 = vadd.f32 0.0, %v368
          %v370 = vpop.f32.mrb[0].mxu0
          %v371 = vpop.f32.mrb[0].mxu0
          %v372 = vpop.f32.mrb[0].mxu0
          %373 = vdwg.mxu0
          %v374 = vadd.f32 %v326, %v369
          %v375 = vxor.u32 %v374, 2147483648
          %v376 = vmul.f32 %v375, 1.442695
          %v377 = vpow.pop %v376
          %v378 = vadd.f32 %v377, 1.0
          %v379 = vrcp.pop %v378
          %v380 = vmul.f32 1.0, %v379
          %v381 = vtanh.pop %v374
          %v382 = vmul.f32 %v380, %v307
          %384 = vrot.lane.b32.xlu0 %v381, 64
          %v385 = vpop.permute.xlu0 %384
          %v387 = vmul.f32 %v380, %v385
          %389 = vrot.lane.b32.xlu0 %v387, 32
          %v390 = vpop.permute.xlu0 %389
          %v392 = vadd.f32 %v382, %v390
          %v393 = vtanh.pop %v392
          %395 = vrot.lane.b32.xlu0 %v393, 64
          %v396 = vpop.permute.xlu0 %395
          %v398 = vmul.f32 %v380, %v396
          %v399 = vstv %s324
          %vm400 = vcmp.lt.s32.totalorder %v399, %v205
          %v401 = vsel %vm400, 1, 0
          %402 = vset.pattern.permute.xlu0 0
          %403 = vperm.xlu0 %402, %v401
          %v404 = vpop.permute.xlu0 %403
          %vm405 = vcmp.eq.s32.totalorder %v404, 1
          %v406 = vsel %vm405, %v392, %v307
          %v407 = vsel %vm405, %v398, %v312
          %p408 = scmp.lt.s32.totalorder %s324, 15
          %s409 = scalar_select %p408, %s324, 15
          %s410 = sld [smem:[#allocation6 + %s409]]
          %v411 = vstv %s410
          %v412 = vmul.f32 %v411, %v398
          %v413 = vsel %vm405, %v412, 0.0
          %415 = vrot.lane.b32.xlu0 %v413, 32
          %v416 = vpop.permute.xlu0 %415
          %v418 = vadd.f32 %v323, %v416
          %s419 = sadd.s32 %s199, 2
          %s420 = scalar_lea.vmem %s171, 4 [#allocation7]
          %v421 = vld [vmem:[%s420] sm:$0x3]
          %v422 = vpack.c.bf16 %v407, %v407
          %424 = vrot.lane.b32.xlu0 %v422, 32
          %v425 = vpop.permute.xlu0 %424
          %v427 = vsel %vm227, %v425, 0
          %429 = vmatprep.subr.bf16.mxu0 0
          %430 = vmatpush1.bf16.msra.mxu0 %v223
          %431 = vmatprep.subr.bf16.mxu0 0
          %432 = vmatpush1.bf16.msra.mxu0 %v224
          %433 = vmatprep.subr.bf16.mxu0 0
          %434 = vmatpush1.bf16.msra.mxu0 0
          %435 = vmatprep.subr.bf16.mxu0 0
          %436 = vmatpush1.bf16.msra.mxu0 0
          %437 = vmatprep.subr.bf16.mxu0 0
          %438 = vmatpush1.bf16.msra.mxu0 0
          %439 = vmatprep.subr.bf16.mxu0 0
          %440 = vmatpush1.bf16.msra.mxu0 0
          %441 = vmatprep.subr.bf16.mxu0 0
          %442 = vmatpush1.bf16.msra.mxu0 0
          %443 = vmatprep.subr.bf16.mxu0 0
          %444 = vmatpush1.bf16.msra.mxu0 0
          %445 = vmatprep.subr.bf16.mxu0 0
          %446 = vmatpush1.bf16.msra.mxu0 0
          %447 = vmatprep.subr.bf16.mxu0 0
          %448 = vmatpush1.bf16.msra.mxu0 0
          %449 = vmatprep.subr.bf16.mxu0 0
          %450 = vmatpush1.bf16.msra.mxu0 0
          %451 = vmatprep.subr.bf16.mxu0 0
          %452 = vmatpush1.bf16.msra.mxu0 0
          %453 = vmatprep.subr.bf16.mxu0 0
          %454 = vmatpush1.bf16.msra.mxu0 0
          %455 = vmatprep.subr.bf16.mxu0 0
          %456 = vmatpush1.bf16.msra.mxu0 0
          %457 = vmatprep.subr.bf16.mxu0 0
          %458 = vmatpush1.bf16.msra.mxu0 0
          %459 = vmatprep.subr.bf16.mxu0 0
          %460 = vmatpush1.bf16.msra.mxu0 0
          %461 = vmatprep.mubr.bf16.mxu0 0
          %462 = vmatmul.mubr.bf16.gmra.mrb[0].mxu0 %v427
          %v463 = vpop.f32.mrb[0].mxu0
          %v464 = vadd.f32 0.0, %v463
          %v465 = vpop.f32.mrb[0].mxu0
          %v466 = vpop.f32.mrb[0].mxu0
          %v467 = vpop.f32.mrb[0].mxu0
          %468 = vdwg.mxu0
          %v469 = vadd.f32 %v421, %v464
          %v470 = vxor.u32 %v469, 2147483648
          %v471 = vmul.f32 %v470, 1.442695
          %v472 = vpow.pop %v471
          %v473 = vadd.f32 %v472, 1.0
          %v474 = vrcp.pop %v473
          %v475 = vmul.f32 1.0, %v474
          %v476 = vtanh.pop %v469
          %v477 = vmul.f32 %v475, %v406
          %479 = vrot.lane.b32.xlu0 %v476, 64
          %v480 = vpop.permute.xlu0 %479
          %v482 = vmul.f32 %v475, %v480
          %484 = vrot.lane.b32.xlu0 %v482, 32
          %v485 = vpop.permute.xlu0 %484
          %v487 = vadd.f32 %v477, %v485
          %v488 = vtanh.pop %v487
          %490 = vrot.lane.b32.xlu0 %v488, 64
          %v491 = vpop.permute.xlu0 %490
          %v493 = vmul.f32 %v475, %v491
          %v494 = vstv %s419
          %vm495 = vcmp.lt.s32.totalorder %v494, %v205
          %v496 = vsel %vm495, 1, 0
          %497 = vset.pattern.permute.xlu0 0
          %498 = vperm.xlu0 %497, %v496
          %v499 = vpop.permute.xlu0 %498
          %vm500 = vcmp.eq.s32.totalorder %v499, 1
          %v501 = vsel %vm500, %v487, %v406
          %v502 = vsel %vm500, %v493, %v407
          %p503 = scmp.lt.s32.totalorder %s419, 15
          %s504 = scalar_select %p503, %s419, 15
          %s505 = sld [smem:[#allocation6 + %s504]]
          %v506 = vstv %s505
          %v507 = vmul.f32 %v506, %v493
          %v508 = vsel %vm500, %v507, 0.0
          %510 = vrot.lane.b32.xlu0 %v508, 32
          %v511 = vpop.permute.xlu0 %510
          %v513 = vadd.f32 %v418, %v511
          %s514 = sadd.s32 %s199, 3
          %s515 = scalar_lea.vmem %s171, 6 [#allocation7]
          %v516 = vld [vmem:[%s515] sm:$0x3]
          %v517 = vpack.c.bf16 %v502, %v502
          %519 = vrot.lane.b32.xlu0 %v517, 32
          %v520 = vpop.permute.xlu0 %519
          %v522 = vsel %vm227, %v520, 0
          %524 = vmatprep.subr.bf16.mxu0 0
          %525 = vmatpush1.bf16.msra.mxu0 %v223
          %526 = vmatprep.subr.bf16.mxu0 0
          %527 = vmatpush1.bf16.msra.mxu0 %v224
          %528 = vmatprep.subr.bf16.mxu0 0
          %529 = vmatpush1.bf16.msra.mxu0 0
          %530 = vmatprep.subr.bf16.mxu0 0
          %531 = vmatpush1.bf16.msra.mxu0 0
          %532 = vmatprep.subr.bf16.mxu0 0
          %533 = vmatpush1.bf16.msra.mxu0 0
          %534 = vmatprep.subr.bf16.mxu0 0
          %535 = vmatpush1.bf16.msra.mxu0 0
          %536 = vmatprep.subr.bf16.mxu0 0
          %537 = vmatpush1.bf16.msra.mxu0 0
          %538 = vmatprep.subr.bf16.mxu0 0
          %539 = vmatpush1.bf16.msra.mxu0 0
          %540 = vmatprep.subr.bf16.mxu0 0
          %541 = vmatpush1.bf16.msra.mxu0 0
          %542 = vmatprep.subr.bf16.mxu0 0
          %543 = vmatpush1.bf16.msra.mxu0 0
          %544 = vmatprep.subr.bf16.mxu0 0
          %545 = vmatpush1.bf16.msra.mxu0 0
          %546 = vmatprep.subr.bf16.mxu0 0
          %547 = vmatpush1.bf16.msra.mxu0 0
          %548 = vmatprep.subr.bf16.mxu0 0
          %549 = vmatpush1.bf16.msra.mxu0 0
          %550 = vmatprep.subr.bf16.mxu0 0
          %551 = vmatpush1.bf16.msra.mxu0 0
          %552 = vmatprep.subr.bf16.mxu0 0
          %553 = vmatpush1.bf16.msra.mxu0 0
          %554 = vmatprep.subr.bf16.mxu0 0
          %555 = vmatpush1.bf16.msra.mxu0 0
          %556 = vmatprep.mubr.bf16.mxu0 0
          %557 = vmatmul.mubr.bf16.gmra.mrb[0].mxu0 %v522
          %v558 = vpop.f32.mrb[0].mxu0
          %v559 = vadd.f32 0.0, %v558
          %v560 = vpop.f32.mrb[0].mxu0
          %v561 = vpop.f32.mrb[0].mxu0
          %v562 = vpop.f32.mrb[0].mxu0
          %563 = vdwg.mxu0
          %v564 = vadd.f32 %v516, %v559
          %v565 = vxor.u32 %v564, 2147483648
          %v566 = vmul.f32 %v565, 1.442695
          %v567 = vpow.pop %v566
          %v568 = vadd.f32 %v567, 1.0
          %v569 = vrcp.pop %v568
          %v570 = vmul.f32 1.0, %v569
          %v571 = vtanh.pop %v564
          %v572 = vmul.f32 %v570, %v501
          %574 = vrot.lane.b32.xlu0 %v571, 64
          %v575 = vpop.permute.xlu0 %574
          %v577 = vmul.f32 %v570, %v575
          %579 = vrot.lane.b32.xlu0 %v577, 32
          %v580 = vpop.permute.xlu0 %579
          %v582 = vadd.f32 %v572, %v580
          %v583 = vtanh.pop %v582
          %585 = vrot.lane.b32.xlu0 %v583, 64
          %v586 = vpop.permute.xlu0 %585
          %v588 = vmul.f32 %v570, %v586
          %v589 = vstv %s514
          %vm590 = vcmp.lt.s32.totalorder %v589, %v205
          %v591 = vsel %vm590, 1, 0
          %592 = vset.pattern.permute.xlu0 0
          %593 = vperm.xlu0 %592, %v591
          %v594 = vpop.permute.xlu0 %593
          %vm595 = vcmp.eq.s32.totalorder %v594, 1
          %v596 = vsel %vm595, %v582, %v501
          %v597 = vsel %vm595, %v588, %v502
          %p598 = scmp.lt.s32.totalorder %s514, 15
          %s599 = scalar_select %p598, %s514, 15
          %s600 = sld [smem:[#allocation6 + %s599]]
          %v601 = vstv %s600
          %v602 = vmul.f32 %v601, %v588
          %v603 = vsel %vm595, %v602, 0.0
          %605 = vrot.lane.b32.xlu0 %v603, 32
          %v606 = vpop.permute.xlu0 %605
          %v608 = vadd.f32 %v513, %v606
          %s609 = sadd.s32 %s199, 4
          %s610 = scalar_lea.vmem %s171, 8 [#allocation7]
          %v611 = vld [vmem:[%s610] sm:$0x3]
          %v612 = vpack.c.bf16 %v597, %v597
          %614 = vrot.lane.b32.xlu0 %v612, 32
          %v615 = vpop.permute.xlu0 %614
          %v617 = vsel %vm227, %v615, 0
          %619 = vmatprep.subr.bf16.mxu0 0
          %620 = vmatpush1.bf16.msra.mxu0 %v223
          %621 = vmatprep.subr.bf16.mxu0 0
          %622 = vmatpush1.bf16.msra.mxu0 %v224
          %623 = vmatprep.subr.bf16.mxu0 0
          %624 = vmatpush1.bf16.msra.mxu0 0
          %625 = vmatprep.subr.bf16.mxu0 0
          %626 = vmatpush1.bf16.msra.mxu0 0
          %627 = vmatprep.subr.bf16.mxu0 0
          %628 = vmatpush1.bf16.msra.mxu0 0
          %629 = vmatprep.subr.bf16.mxu0 0
          %630 = vmatpush1.bf16.msra.mxu0 0
          %631 = vmatprep.subr.bf16.mxu0 0
          %632 = vmatpush1.bf16.msra.mxu0 0
          %633 = vmatprep.subr.bf16.mxu0 0
          %634 = vmatpush1.bf16.msra.mxu0 0
          %635 = vmatprep.subr.bf16.mxu0 0
          %636 = vmatpush1.bf16.msra.mxu0 0
          %637 = vmatprep.subr.bf16.mxu0 0
          %638 = vmatpush1.bf16.msra.mxu0 0
          %639 = vmatprep.subr.bf16.mxu0 0
          %640 = vmatpush1.bf16.msra.mxu0 0
          %641 = vmatprep.subr.bf16.mxu0 0
          %642 = vmatpush1.bf16.msra.mxu0 0
          %643 = vmatprep.subr.bf16.mxu0 0
          %644 = vmatpush1.bf16.msra.mxu0 0
          %645 = vmatprep.subr.bf16.mxu0 0
          %646 = vmatpush1.bf16.msra.mxu0 0
          %647 = vmatprep.subr.bf16.mxu0 0
          %648 = vmatpush1.bf16.msra.mxu0 0
          %649 = vmatprep.subr.bf16.mxu0 0
          %650 = vmatpush1.bf16.msra.mxu0 0
          %651 = vmatprep.mubr.bf16.mxu0 0
          %652 = vmatmul.mubr.bf16.gmra.mrb[0].mxu0 %v617
          %v653 = vpop.f32.mrb[0].mxu0
          %v654 = vadd.f32 0.0, %v653
          %v655 = vpop.f32.mrb[0].mxu0
          %v656 = vpop.f32.mrb[0].mxu0
          %v657 = vpop.f32.mrb[0].mxu0
          %658 = vdwg.mxu0
          %v659 = vadd.f32 %v611, %v654
          %v660 = vxor.u32 %v659, 2147483648
          %v661 = vmul.f32 %v660, 1.442695
          %v662 = vpow.pop %v661
          %v663 = vadd.f32 %v662, 1.0
          %v664 = vrcp.pop %v663
          %v665 = vmul.f32 1.0, %v664
          %v666 = vtanh.pop %v659
          %v667 = vmul.f32 %v665, %v596
          %669 = vrot.lane.b32.xlu0 %v666, 64
          %v670 = vpop.permute.xlu0 %669
          %v672 = vmul.f32 %v665, %v670
          %674 = vrot.lane.b32.xlu0 %v672, 32
          %v675 = vpop.permute.xlu0 %674
          %v677 = vadd.f32 %v667, %v675
          %v678 = vtanh.pop %v677
          %680 = vrot.lane.b32.xlu0 %v678, 64
          %v681 = vpop.permute.xlu0 %680
          %v683 = vmul.f32 %v665, %v681
          %v684 = vstv %s609
          %vm685 = vcmp.lt.s32.totalorder %v684, %v205
          %v686 = vsel %vm685, 1, 0
          %687 = vset.pattern.permute.xlu0 0
          %688 = vperm.xlu0 %687, %v686
          %v689 = vpop.permute.xlu0 %688
          %vm690 = vcmp.eq.s32.totalorder %v689, 1
          %v691 = vsel %vm690, %v677, %v596
          %v692 = vsel %vm690, %v683, %v597
          %p693 = scmp.lt.s32.totalorder %s609, 15
          %s694 = scalar_select %p693, %s609, 15
          %s695 = sld [smem:[#allocation6 + %s694]]
          %v696 = vstv %s695
          %v697 = vmul.f32 %v696, %v683
          %v698 = vsel %vm690, %v697, 0.0
          %700 = vrot.lane.b32.xlu0 %v698, 32
          %v701 = vpop.permute.xlu0 %700
          %v703 = vadd.f32 %v608, %v701
          %s704 = sadd.s32 %s199, 5
          %s705 = scalar_lea.vmem %s171, 10 [#allocation7]
          %v706 = vld [vmem:[%s705] sm:$0x3]
          %v707 = vpack.c.bf16 %v692, %v692
          %709 = vrot.lane.b32.xlu0 %v707, 32
          %v710 = vpop.permute.xlu0 %709
          %v712 = vsel %vm227, %v710, 0
          %714 = vmatprep.subr.bf16.mxu0 0
          %715 = vmatpush1.bf16.msra.mxu0 %v223
          %716 = vmatprep.subr.bf16.mxu0 0
          %717 = vmatpush1.bf16.msra.mxu0 %v224
          %718 = vmatprep.subr.bf16.mxu0 0
          %719 = vmatpush1.bf16.msra.mxu0 0
          %720 = vmatprep.subr.bf16.mxu0 0
          %721 = vmatpush1.bf16.msra.mxu0 0
          %722 = vmatprep.subr.bf16.mxu0 0
          %723 = vmatpush1.bf16.msra.mxu0 0
          %724 = vmatprep.subr.bf16.mxu0 0
          %725 = vmatpush1.bf16.msra.mxu0 0
          %726 = vmatprep.subr.bf16.mxu0 0
          %727 = vmatpush1.bf16.msra.mxu0 0
          %728 = vmatprep.subr.bf16.mxu0 0
          %729 = vmatpush1.bf16.msra.mxu0 0
          %730 = vmatprep.subr.bf16.mxu0 0
          %731 = vmatpush1.bf16.msra.mxu0 0
          %732 = vmatprep.subr.bf16.mxu0 0
          %733 = vmatpush1.bf16.msra.mxu0 0
          %734 = vmatprep.subr.bf16.mxu0 0
          %735 = vmatpush1.bf16.msra.mxu0 0
          %736 = vmatprep.subr.bf16.mxu0 0
          %737 = vmatpush1.bf16.msra.mxu0 0
          %738 = vmatprep.subr.bf16.mxu0 0
          %739 = vmatpush1.bf16.msra.mxu0 0
          %740 = vmatprep.subr.bf16.mxu0 0
          %741 = vmatpush1.bf16.msra.mxu0 0
          %742 = vmatprep.subr.bf16.mxu0 0
          %743 = vmatpush1.bf16.msra.mxu0 0
          %744 = vmatprep.subr.bf16.mxu0 0
          %745 = vmatpush1.bf16.msra.mxu0 0
          %746 = vmatprep.mubr.bf16.mxu0 0
          %747 = vmatmul.mubr.bf16.gmra.mrb[0].mxu0 %v712
          %v748 = vpop.f32.mrb[0].mxu0
          %v749 = vadd.f32 0.0, %v748
          %v750 = vpop.f32.mrb[0].mxu0
          %v751 = vpop.f32.mrb[0].mxu0
          %v752 = vpop.f32.mrb[0].mxu0
          %753 = vdwg.mxu0
          %v754 = vadd.f32 %v706, %v749
          %v755 = vxor.u32 %v754, 2147483648
          %v756 = vmul.f32 %v755, 1.442695
          %v757 = vpow.pop %v756
          %v758 = vadd.f32 %v757, 1.0
          %v759 = vrcp.pop %v758
          %v760 = vmul.f32 1.0, %v759
          %v761 = vtanh.pop %v754
          %v762 = vmul.f32 %v760, %v691
          %764 = vrot.lane.b32.xlu0 %v761, 64
          %v765 = vpop.permute.xlu0 %764
          %v767 = vmul.f32 %v760, %v765
          %769 = vrot.lane.b32.xlu0 %v767, 32
          %v770 = vpop.permute.xlu0 %769
          %v772 = vadd.f32 %v762, %v770
          %v773 = vtanh.pop %v772
          %775 = vrot.lane.b32.xlu0 %v773, 64
          %v776 = vpop.permute.xlu0 %775
          %v778 = vmul.f32 %v760, %v776
          %v779 = vstv %s704
          %vm780 = vcmp.lt.s32.totalorder %v779, %v205
          %v781 = vsel %vm780, 1, 0
          %782 = vset.pattern.permute.xlu0 0
          %783 = vperm.xlu0 %782, %v781
          %v784 = vpop.permute.xlu0 %783
          %vm785 = vcmp.eq.s32.totalorder %v784, 1
          %v786 = vsel %vm785, %v772, %v691
          %v787 = vsel %vm785, %v778, %v692
          %p788 = scmp.lt.s32.totalorder %s704, 15
          %s789 = scalar_select %p788, %s704, 15
          %s790 = sld [smem:[#allocation6 + %s789]]
          %v791 = vstv %s790
          %v792 = vmul.f32 %v791, %v778
          %v793 = vsel %vm785, %v792, 0.0
          %795 = vrot.lane.b32.xlu0 %v793, 32
          %v796 = vpop.permute.xlu0 %795
          %v798 = vadd.f32 %v703, %v796
          %s799 = sadd.s32 %s199, 6
          %s800 = scalar_lea.vmem %s171, 12 [#allocation7]
          %v801 = vld [vmem:[%s800] sm:$0x3]
          %v802 = vpack.c.bf16 %v787, %v787
          %804 = vrot.lane.b32.xlu0 %v802, 32
          %v805 = vpop.permute.xlu0 %804
          %v807 = vsel %vm227, %v805, 0
          %809 = vmatprep.subr.bf16.mxu0 0
          %810 = vmatpush1.bf16.msra.mxu0 %v223
          %811 = vmatprep.subr.bf16.mxu0 0
          %812 = vmatpush1.bf16.msra.mxu0 %v224
          %813 = vmatprep.subr.bf16.mxu0 0
          %814 = vmatpush1.bf16.msra.mxu0 0
          %815 = vmatprep.subr.bf16.mxu0 0
          %816 = vmatpush1.bf16.msra.mxu0 0
          %817 = vmatprep.subr.bf16.mxu0 0
          %818 = vmatpush1.bf16.msra.mxu0 0
          %819 = vmatprep.subr.bf16.mxu0 0
          %820 = vmatpush1.bf16.msra.mxu0 0
          %821 = vmatprep.subr.bf16.mxu0 0
          %822 = vmatpush1.bf16.msra.mxu0 0
          %823 = vmatprep.subr.bf16.mxu0 0
          %824 = vmatpush1.bf16.msra.mxu0 0
          %825 = vmatprep.subr.bf16.mxu0 0
          %826 = vmatpush1.bf16.msra.mxu0 0
          %827 = vmatprep.subr.bf16.mxu0 0
          %828 = vmatpush1.bf16.msra.mxu0 0
          %829 = vmatprep.subr.bf16.mxu0 0
          %830 = vmatpush1.bf16.msra.mxu0 0
          %831 = vmatprep.subr.bf16.mxu0 0
          %832 = vmatpush1.bf16.msra.mxu0 0
          %833 = vmatprep.subr.bf16.mxu0 0
          %834 = vmatpush1.bf16.msra.mxu0 0
          %835 = vmatprep.subr.bf16.mxu0 0
          %836 = vmatpush1.bf16.msra.mxu0 0
          %837 = vmatprep.subr.bf16.mxu0 0
          %838 = vmatpush1.bf16.msra.mxu0 0
          %839 = vmatprep.subr.bf16.mxu0 0
          %840 = vmatpush1.bf16.msra.mxu0 0
          %841 = vmatprep.mubr.bf16.mxu0 0
          %842 = vmatmul.mubr.bf16.gmra.mrb[0].mxu0 %v807
          %v843 = vpop.f32.mrb[0].mxu0
          %v844 = vadd.f32 0.0, %v843
          %v845 = vpop.f32.mrb[0].mxu0
          %v846 = vpop.f32.mrb[0].mxu0
          %v847 = vpop.f32.mrb[0].mxu0
          %848 = vdwg.mxu0
          %v849 = vadd.f32 %v801, %v844
          %v850 = vxor.u32 %v849, 2147483648
          %v851 = vmul.f32 %v850, 1.442695
          %v852 = vpow.pop %v851
          %v853 = vadd.f32 %v852, 1.0
          %v854 = vrcp.pop %v853
          %v855 = vmul.f32 1.0, %v854
          %v856 = vtanh.pop %v849
          %v857 = vmul.f32 %v855, %v786
          %859 = vrot.lane.b32.xlu0 %v856, 64
          %v860 = vpop.permute.xlu0 %859
          %v862 = vmul.f32 %v855, %v860
          %864 = vrot.lane.b32.xlu0 %v862, 32
          %v865 = vpop.permute.xlu0 %864
          %v867 = vadd.f32 %v857, %v865
          %v868 = vtanh.pop %v867
          %870 = vrot.lane.b32.xlu0 %v868, 64
          %v871 = vpop.permute.xlu0 %870
          %v873 = vmul.f32 %v855, %v871
          %v874 = vstv %s799
          %vm875 = vcmp.lt.s32.totalorder %v874, %v205
          %v876 = vsel %vm875, 1, 0
          %877 = vset.pattern.permute.xlu0 0
          %878 = vperm.xlu0 %877, %v876
          %v879 = vpop.permute.xlu0 %878
          %vm880 = vcmp.eq.s32.totalorder %v879, 1
          %v881 = vsel %vm880, %v867, %v786
          %v882 = vsel %vm880, %v873, %v787
          %p883 = scmp.lt.s32.totalorder %s799, 15
          %s884 = scalar_select %p883, %s799, 15
          %s885 = sld [smem:[#allocation6 + %s884]]
          %v886 = vstv %s885
          %v887 = vmul.f32 %v886, %v873
          %v888 = vsel %vm880, %v887, 0.0
          %890 = vrot.lane.b32.xlu0 %v888, 32
          %v891 = vpop.permute.xlu0 %890
          %v893 = vadd.f32 %v798, %v891
          %s894 = sadd.s32 %s199, 7
          %s895 = scalar_lea.vmem %s171, 14 [#allocation7]
          %v896 = vld [vmem:[%s895] sm:$0x3]
          %v897 = vpack.c.bf16 %v882, %v882
          %899 = vrot.lane.b32.xlu0 %v897, 32
          %v900 = vpop.permute.xlu0 %899
          %v902 = vsel %vm227, %v900, 0
          %904 = vmatprep.subr.bf16.mxu0 0
          %905 = vmatpush1.bf16.msra.mxu0 %v223
          %906 = vmatprep.subr.bf16.mxu0 0
          %907 = vmatpush1.bf16.msra.mxu0 %v224
          %908 = vmatprep.subr.bf16.mxu0 0
          %909 = vmatpush1.bf16.msra.mxu0 0
          %910 = vmatprep.subr.bf16.mxu0 0
          %911 = vmatpush1.bf16.msra.mxu0 0
          %912 = vmatprep.subr.bf16.mxu0 0
          %913 = vmatpush1.bf16.msra.mxu0 0
          %914 = vmatprep.subr.bf16.mxu0 0
          %915 = vmatpush1.bf16.msra.mxu0 0
          %916 = vmatprep.subr.bf16.mxu0 0
          %917 = vmatpush1.bf16.msra.mxu0 0
          %918 = vmatprep.subr.bf16.mxu0 0
          %919 = vmatpush1.bf16.msra.mxu0 0
          %920 = vmatprep.subr.bf16.mxu0 0
          %921 = vmatpush1.bf16.msra.mxu0 0
          %922 = vmatprep.subr.bf16.mxu0 0
          %923 = vmatpush1.bf16.msra.mxu0 0
          %924 = vmatprep.subr.bf16.mxu0 0
          %925 = vmatpush1.bf16.msra.mxu0 0
          %926 = vmatprep.subr.bf16.mxu0 0
          %927 = vmatpush1.bf16.msra.mxu0 0
          %928 = vmatprep.subr.bf16.mxu0 0
          %929 = vmatpush1.bf16.msra.mxu0 0
          %930 = vmatprep.subr.bf16.mxu0 0
          %931 = vmatpush1.bf16.msra.mxu0 0
          %932 = vmatprep.subr.bf16.mxu0 0
          %933 = vmatpush1.bf16.msra.mxu0 0
          %934 = vmatprep.subr.bf16.mxu0 0
          %935 = vmatpush1.bf16.msra.mxu0 0
          %936 = vmatprep.mubr.bf16.mxu0 0
          %937 = vmatmul.mubr.bf16.gmra.mrb[0].mxu0 %v902
          %v938 = vpop.f32.mrb[0].mxu0
          %v939 = vadd.f32 0.0, %v938
          %v940 = vpop.f32.mrb[0].mxu0
          %v941 = vpop.f32.mrb[0].mxu0
          %v942 = vpop.f32.mrb[0].mxu0
          %943 = vdwg.mxu0
          %v944 = vadd.f32 %v896, %v939
          %v945 = vxor.u32 %v944, 2147483648
          %v946 = vmul.f32 %v945, 1.442695
          %v947 = vpow.pop %v946
          %v948 = vadd.f32 %v947, 1.0
          %v949 = vrcp.pop %v948
          %v950 = vmul.f32 1.0, %v949
          %v951 = vtanh.pop %v944
          %v952 = vmul.f32 %v950, %v881
          %954 = vrot.lane.b32.xlu0 %v951, 64
          %v955 = vpop.permute.xlu0 %954
          %v957 = vmul.f32 %v950, %v955
          %959 = vrot.lane.b32.xlu0 %v957, 32
          %v960 = vpop.permute.xlu0 %959
          %v962 = vadd.f32 %v952, %v960
          %v963 = vtanh.pop %v962
          %965 = vrot.lane.b32.xlu0 %v963, 64
          %v966 = vpop.permute.xlu0 %965
          %v968 = vmul.f32 %v950, %v966
          %v969 = vstv %s894
          %vm970 = vcmp.lt.s32.totalorder %v969, %v205
          %v971 = vsel %vm970, 1, 0
          %972 = vset.pattern.permute.xlu0 0
          %973 = vperm.xlu0 %972, %v971
          %v974 = vpop.permute.xlu0 %973
          %vm975 = vcmp.eq.s32.totalorder %v974, 1
          %v976 = vsel %vm975, %v962, %v881
          %v977 = vsel %vm975, %v968, %v882
          %p978 = scmp.lt.s32.totalorder %s894, 15
          %s979 = scalar_select %p978, %s894, 15
          %s980 = sld [smem:[#allocation6 + %s979]]
          %v981 = vstv %s980
          %v982 = vmul.f32 %v981, %v968
          %v983 = vsel %vm975, %v982, 0.0
          %985 = vrot.lane.b32.xlu0 %v983, 32
          %v986 = vpop.permute.xlu0 %985
          %v988 = vadd.f32 %v893, %v986
          %990 = vrot.lane.b32.xlu0 %v977, 32
          %v991 = vpop.permute.xlu0 %990
          %vm993 = vcmask 254976
          %994 = vst.msk [vmem:[#allocation2] sm:$0x3] %vm993, %v991
          %996 = vrot.lane.b32.xlu0 %v976, 96
          %v997 = vpop.permute.xlu0 %996
          %999 = vst.msk [vmem:[#allocation3] sm:$0x3] %vm993, %v997
          %1000 = vst.msk [vmem:[#allocation10] sm:$0x3] %vm993, %v988
        $region44: #{tpu_custom_call.1} parent=31 // pred_fallthru
          _
        // Predicated region
        $region45: #{tpu_custom_call.1} parent=31 // pred_check
          %p1001 = pneg %p111
        $region46: #{tpu_custom_call.1} parent=31 // pred_check_branch
          %1003 = sbr.rel (%p1001) target = $region48
        $region47: #{tpu_custom_call.1} parent=31 // pred_region
          %s1005 = ssub.s32 32, 32
          %1006 = vsyncadd [#allocation9], %s1005
          %s1008 = sshll.u32 [#allocation10], 4
          %s1009 = int_to_ptr.vmem [resolvable:$true] %s1008
          %1011 = dma.vmem_to_hbm [thread:$0]  %s1009, 32, %s5, [#allocation9]
        $region48: #{tpu_custom_call.1} parent=31 // pred_fallthru
          _
        // Predicated region
        $region49: #{tpu_custom_call.1} parent=31 // pred_check
          %p1012 = pneg %p111
        $region50: #{tpu_custom_call.1} parent=31 // pred_check_branch
          %1014 = sbr.rel (%p1012) target = $region52
        $region51: #{tpu_custom_call.1} parent=31 // pred_region
          %1015 = dma.done [#allocation9], 32
        $region52: #{tpu_custom_call.1} parent=31 // pred_fallthru
          _
      $region32: #{tpu_custom_call.1} parent=5 // pred_fallthru
        _
      %p1016 = scmp.le.s32.totalorder 2, %s25
      // Predicated region
      $region53: #{tpu_custom_call.1} parent=5 // pred_check
        %p1017 = pneg %p1016
      $region54: #{tpu_custom_call.1} parent=5 // pred_check_branch
        %1019 = sbr.rel (%p1017) target = $region56
      $region55: #{tpu_custom_call.1} parent=5 // pred_region
        %s1020 = ssub.s32 %s25, 2
      $region56: #{tpu_custom_call.1} parent=5 // pred_fallthru
        _
    $region6: #{tpu_custom_call.1} parent=1 // loop_footer
      %s29 = sadd.s32 1, %s25
    $region7: #{tpu_custom_call.1} parent=1 // loop_footer_branch
      %24 = sbr.rel target = $region3
    $region8: #{tpu_custom_call.1} parent=1 // loop_exit
      _
    %1021 = vsyncpa [#allocation8], 1
    %s1022 = scalar_lea.sflag [#allocation8], 1
    %1023 = vsyncpa %s1022, 1
    %1024 = vsyncpa [#allocation9], 1
    %s1025 = scalar_lea.sflag [#allocation9], 1
    %1026 = vsyncpa %s1025, 1

</llo_original>
